<compile_context>
chip_gen: v6e
topology: v6e:2x2x1
jax: 0.10.0
libtpu: 0.0.40
codegen_flags: <defaults>
</compile_context>

<pallas_src>
import jax
import jax.numpy as jnp
from jax import lax
from jax.experimental import pallas as pl
from jax.experimental.pallas import tpu as pltpu
import numpy as np

INPUT_SIZE = 3
HIDDEN_SIZE = 64
NUM_LAYERS = 2  # kernel below is hard-wired to 2 layers


def lstm_predictor_kernel(x_ref, wih0_ref, b0_ref, whh0_ref,
                          wih1_ref, whh1_ref, b1_ref,
                          wlin_ref, blin_ref, out_ref, xp_ref):
    """2-layer LSTM recurrence + linear head, single program, all in VMEM.

    x_ref   : (T*B, I)  time-major flattened input (row = t*B + b), f32
    wih0_ref: (I, 4H)   layer-0 input weight (transposed), f32
    b0_ref  : (1, 4H)   layer-0 bias (b_ih + b_hh), f32
    whh0_ref: (H, 4H)   layer-0 recurrent weight (transposed), bf16
    wih1_ref: (H, 4H)   layer-1 input weight (transposed), bf16
    whh1_ref: (H, 4H)   layer-1 recurrent weight (transposed), bf16
    b1_ref  : (1, 4H)   layer-1 bias (b_ih + b_hh), f32
    wlin_ref: (H, I)    linear head weight (transposed), bf16
    blin_ref: (1, I)    linear head bias, f32
    out_ref : (B, I)    predictions, f32
    xp_ref  : (T*B, 4H) VMEM scratch for the layer-0 input projection
    """
    TB, G = xp_ref.shape
    H = G // 4
    B = out_ref.shape[0]
    T = TB // B

    # Rec 1: ONE matmul for the layer-0 input projection of all T timesteps,
    # written straight into VMEM scratch (no HBM round trip, no extra dispatch).
    xp_ref[...] = (jnp.dot(x_ref[...], wih0_ref[...],
                           preferred_element_type=jnp.float32)
                   + b0_ref[...])

    # Hoist the layer-1 bias broadcast out of the recurrence
    # (JAX does not CSE broadcast_in_dim).
    b1 = jnp.broadcast_to(b1_ref[...], (B, G))

    def gates_to_hc(gates, c):
        # Rec 4: i,f occupy the lane-aligned first 2H columns (sigmoid only);
        # g,o occupy the last 2H (tanh for g, sigmoid for o): 3 EUP pushes on
        # (B, 2H) halves instead of full-width sigmoid + full-width tanh.
        if_part = gates[:, :2 * H]
        go_part = gates[:, 2 * H:]
        sig_if = jax.nn.sigmoid(if_part)
        sig_go = jax.nn.sigmoid(go_part)
        th_go = jnp.tanh(go_part)
        i_g = sig_if[:, :H]
        f_g = sig_if[:, H:]
        g_g = th_go[:, :H]
        o_g = sig_go[:, H:]
        c_new = f_g * c + i_g * g_g
        h_new = o_g * jnp.tanh(c_new)
        return h_new, c_new

    # Gate order matches PyTorch [i, f, g, o]; inter-layer dropout is identity
    # at inference time.  T is static and small -> fully unrolled with static
    # slice starts (equivalent graph to fori_loop(unroll=True)).
    h0 = c0 = h1 = c1 = jnp.zeros((B, H), jnp.float32)
    for t in range(T):
        # Rec 2/3: both recurrent matmuls depend only on the PREVIOUS carry, so
        # they are issued first (layer-1's recurrent term overlaps layer-0's
        # nonlinearity).  bf16 LHS/RHS, f32 accumulation on the MXU.
        r0 = jnp.dot(h0.astype(jnp.bfloat16), whh0_ref[...],
                     preferred_element_type=jnp.float32)
        r1 = jnp.dot(h1.astype(jnp.bfloat16), whh1_ref[...],
                     preferred_element_type=jnp.float32)

        g0 = xp_ref[pl.ds(t * B, B), :] + r0
        h0, c0 = gates_to_hc(g0, c0)

        g1 = (jnp.dot(h0.astype(jnp.bfloat16), wih1_ref[...],
                      preferred_element_type=jnp.float32) + r1 + b1)
        h1, c1 = gates_to_hc(g1, c1)

    # Linear head on the last timestep's top-layer hidden state.
    # (N = I = 3 -> one masked vst; negligible for a single store.)
    out_ref[...] = (jnp.dot(h1.astype(jnp.bfloat16), wlin_ref[...],
                            preferred_element_type=jnp.float32)
                    + blin_ref[...])


def prepare_params(p):
    """One-time weight prep (outside the per-call path): cast serial-chain MXU
    operands to bf16; keep biases and the one-shot projection weight in f32."""
    return dict(
        wih0=p["wih0"].astype(jnp.float32),
        b0=p["b0"].astype(jnp.float32),
        whh0=p["whh0"].astype(jnp.bfloat16),
        wih1=p["wih1"].astype(jnp.bfloat16),
        whh1=p["whh1"].astype(jnp.bfloat16),
        b1=p["b1"].astype(jnp.float32),
        wlin=p["wlin"].astype(jnp.bfloat16),
        blin=p["blin"].astype(jnp.float32),
    )


@jax.jit
def lstm_predictor(x, kp):
    """x: (B, T, I) float32, batch_first like the PyTorch module."""
    B, T, I = x.shape
    H = kp["whh0"].shape[0]

    # Tiny time-major flatten (T*B*I = 48 elements) so the kernel can do ONE
    # (T*B, I) @ (I, 4H) projection and slice contiguous (B, 4H) rows per step.
    x_tm = jnp.transpose(x, (1, 0, 2)).reshape(T * B, I)

    args = (x_tm, kp["wih0"], kp["b0"], kp["whh0"],
            kp["wih1"], kp["whh1"], kp["b1"], kp["wlin"], kp["blin"])

    # Everything (input + weights + scratch ~ a few hundred KiB) fits VMEM on
    # every generation: single program, no grid, no tiling (Rec 7).
    vmem = pl.BlockSpec(memory_space=pltpu.MemorySpace.VMEM)
    return pl.pallas_call(
        lstm_predictor_kernel,
        out_shape=jax.ShapeDtypeStruct((B, I), jnp.float32),
        in_specs=[vmem] * len(args),
        out_specs=vmem,
        scratch_shapes=[pltpu.VMEM((T * B, 4 * H), jnp.float32)],
    )(*args)


def init_params(key, input_size=INPUT_SIZE, hidden_size=HIDDEN_SIZE):
    """Deterministic PyTorch-style init: U(-1/sqrt(H), 1/sqrt(H))."""
    k = 1.0 / np.sqrt(hidden_size)
    keys = jax.random.split(key, 12)

    def u(kk, shape, bound):
        return jax.random.uniform(kk, shape, jnp.float32, -bound, bound)

    H, I = hidden_size, input_size
    # Layer 0 (input_size -> H), layer 1 (H -> H). Weights stored transposed.
    wih0 = u(keys[0], (I, 4 * H), k)
    whh0 = u(keys[1], (H, 4 * H), k)
    b0 = (u(keys[2], (1, 4 * H), k) + u(keys[3], (1, 4 * H), k))  # b_ih + b_hh
    wih1 = u(keys[4], (H, 4 * H), k)
    whh1 = u(keys[5], (H, 4 * H), k)
    b1 = (u(keys[6], (1, 4 * H), k) + u(keys[7], (1, 4 * H), k))
    klin = 1.0 / np.sqrt(H)
    wlin = u(keys[8], (H, I), klin)
    blin = u(keys[9], (1, I), klin)
    return dict(wih0=wih0, whh0=whh0, b0=b0,
                wih1=wih1, whh1=whh1, b1=b1,
                wlin=wlin, blin=blin)


def reference_forward(x, p):
    """Pure-JAX f32 reference with identical semantics (for verification)."""
    B, T, I = x.shape
    H = p["whh0"].shape[0]

    def cell(x_t, h, c, wih, whh, b):
        g = x_t @ wih + h @ whh + b
        i_g = jax.nn.sigmoid(g[:, 0 * H:1 * H])
        f_g = jax.nn.sigmoid(g[:, 1 * H:2 * H])
        g_g = jnp.tanh(g[:, 2 * H:3 * H])
        o_g = jax.nn.sigmoid(g[:, 3 * H:4 * H])
        c = f_g * c + i_g * g_g
        return o_g * jnp.tanh(c), c

    def step(carry, x_t):
        h0, c0, h1, c1 = carry
        h0, c0 = cell(x_t, h0, c0, p["wih0"], p["whh0"], p["b0"])
        h1, c1 = cell(h0, h1, c1, p["wih1"], p["whh1"], p["b1"])
        return (h0, c0, h1, c1), None

    zeros = jnp.zeros((B, H), jnp.float32)
    (h0, c0, h1, c1), _ = lax.scan(step, (zeros,) * 4,
                                   jnp.transpose(x, (1, 0, 2)))
    return h1 @ p["wlin"] + p["blin"]


if __name__ == "__main__":
    key = jax.random.PRNGKey(0)
    k_x, k_p = jax.random.split(key)

    B, T, I = 2, 8, INPUT_SIZE
    x = jax.random.normal(k_x, (B, T, I), jnp.float32)
    params = init_params(k_p)
    kernel_params = prepare_params(params)   # one-time bf16 weight prep

    out = lstm_predictor(x, kernel_params)
    out = jax.block_until_ready(out)

    ref = jax.block_until_ready(reference_forward(x, params))
    assert out.shape == (B, I)
    # bf16 MXU operands (f32 accumulation): tolerance relaxed per review.
    np.testing.assert_allclose(np.asarray(out), np.asarray(ref),
                               rtol=2e-2, atol=2e-2)
    print("KERNEL_OK")
</pallas_src>

<mosaic_0001>
module attributes {stable_mosaic.version = 11 : i64} {
  func.func @lstm_predictor_kernel(%arg0: memref<16x3xf32, #tpu.memory_space<vmem>>, %arg1: memref<3x256xf32, #tpu.memory_space<vmem>>, %arg2: memref<1x256xf32, #tpu.memory_space<vmem>>, %arg3: memref<64x256xbf16, #tpu.memory_space<vmem>>, %arg4: memref<64x256xbf16, #tpu.memory_space<vmem>>, %arg5: memref<64x256xbf16, #tpu.memory_space<vmem>>, %arg6: memref<1x256xf32, #tpu.memory_space<vmem>>, %arg7: memref<64x3xbf16, #tpu.memory_space<vmem>>, %arg8: memref<1x3xf32, #tpu.memory_space<vmem>>, %arg9: memref<2x3xf32, #tpu.memory_space<vmem>>, %arg10: memref<16x256xf32, #tpu.memory_space<vmem>>) attributes {dimension_semantics = [], scalar_prefetch = 0 : i64, scratch_operands = 1 : i64, tpu.core_type = #tpu.core_type<tc>} {
    %c0 = arith.constant 0 : index
    %c0_0 = arith.constant 0 : index
    %0 = vector.load %arg0[%c0, %c0_0] : memref<16x3xf32, #tpu.memory_space<vmem>>, vector<16x3xf32>
    %c0_1 = arith.constant 0 : index
    %c0_2 = arith.constant 0 : index
    %1 = vector.load %arg1[%c0_1, %c0_2] : memref<3x256xf32, #tpu.memory_space<vmem>>, vector<3x256xf32>
    %cst = arith.constant dense<0.000000e+00> : vector<16x256xf32>
    %2 = tpu.matmul %0, %1, %cst {dimension_numbers = #tpu.dot_dimension_numbers<[1], [0], [0], [1], [0, 0, 1, 1], [], []>} : vector<16x3xf32>, vector<3x256xf32>, vector<16x256xf32> -> vector<16x256xf32>
    %c0_3 = arith.constant 0 : index
    %c0_4 = arith.constant 0 : index
    %3 = vector.load %arg2[%c0_3, %c0_4] : memref<1x256xf32, #tpu.memory_space<vmem>>, vector<1x256xf32>
    %4 = vector.broadcast %3 : vector<1x256xf32> to vector<16x256xf32>
    %5 = arith.addf %2, %4 : vector<16x256xf32>
    %c0_5 = arith.constant 0 : index
    %c0_6 = arith.constant 0 : index
    %6 = vector.load %arg10[%c0_5, %c0_6] : memref<16x256xf32, #tpu.memory_space<vmem>>, vector<16x256xf32>
    tpu.vector_store %arg10[%c0_5, %c0_6], %5 {strides = array<i32>} : memref<16x256xf32, #tpu.memory_space<vmem>>, vector<16x256xf32>,
    %c0_7 = arith.constant 0 : index
    %c0_8 = arith.constant 0 : index
    %7 = vector.load %arg6[%c0_7, %c0_8] : memref<1x256xf32, #tpu.memory_space<vmem>>, vector<1x256xf32>
    %8 = vector.shape_cast %7 : vector<1x256xf32> to vector<1x256xf32>
    %9 = vector.broadcast %8 : vector<1x256xf32> to vector<2x256xf32>
    %cst_9 = arith.constant 0.000000e+00 : f32
    %10 = vector.broadcast %cst_9 : f32 to vector<2x64xf32>
    %11 = arith.truncf %10 : vector<2x64xf32> to vector<2x64xbf16>
    %c0_10 = arith.constant 0 : index
    %c0_11 = arith.constant 0 : index
    %12 = vector.load %arg3[%c0_10, %c0_11] : memref<64x256xbf16, #tpu.memory_space<vmem>>, vector<64x256xbf16>
    %cst_12 = arith.constant dense<0.000000e+00> : vector<2x256xf32>
    %13 = tpu.matmul %11, %12, %cst_12 {dimension_numbers = #tpu.dot_dimension_numbers<[1], [0], [0], [1], [0, 0, 1, 1], [], []>} : vector<2x64xbf16>, vector<64x256xbf16>, vector<2x256xf32> -> vector<2x256xf32>
    %14 = arith.truncf %10 : vector<2x64xf32> to vector<2x64xbf16>
    %c0_13 = arith.constant 0 : index
    %c0_14 = arith.constant 0 : index
    %15 = vector.load %arg5[%c0_13, %c0_14] : memref<64x256xbf16, #tpu.memory_space<vmem>>, vector<64x256xbf16>
    %cst_15 = arith.constant dense<0.000000e+00> : vector<2x256xf32>
    %16 = tpu.matmul %14, %15, %cst_15 {dimension_numbers = #tpu.dot_dimension_numbers<[1], [0], [0], [1], [0, 0, 1, 1], [], []>} : vector<2x64xbf16>, vector<64x256xbf16>, vector<2x256xf32> -> vector<2x256xf32>
    %c0_16 = arith.constant 0 : index
    %c0_17 = arith.constant 0 : index
    %17 = vector.load %arg10[%c0_16, %c0_17] : memref<16x256xf32, #tpu.memory_space<vmem>>, vector<2x256xf32>
    %18 = arith.addf %17, %13 : vector<2x256xf32>
    %19 = vector.extract_strided_slice %18 {offsets = [0, 0], sizes = [2, 128], strides = [1, 1]} : vector<2x256xf32> to vector<2x128xf32>
    %20 = vector.extract_strided_slice %18 {offsets = [0, 128], sizes = [2, 128], strides = [1, 1]} : vector<2x256xf32> to vector<2x128xf32>
    %21 = arith.negf %19 : vector<2x128xf32>
    %22 = math.exp %21 : vector<2x128xf32>
    %cst_18 = arith.constant 1.000000e+00 : f32
    %23 = vector.broadcast %cst_18 : f32 to vector<2x128xf32>
    %24 = arith.addf %23, %22 : vector<2x128xf32>
    %25 = arith.divf %23, %24 : vector<2x128xf32>
    %26 = arith.negf %20 : vector<2x128xf32>
    %27 = math.exp %26 : vector<2x128xf32>
    %cst_19 = arith.constant 1.000000e+00 : f32
    %28 = vector.broadcast %cst_19 : f32 to vector<2x128xf32>
    %29 = arith.addf %28, %27 : vector<2x128xf32>
    %30 = arith.divf %28, %29 : vector<2x128xf32>
    %31 = math.tanh %20 : vector<2x128xf32>
    %32 = vector.extract_strided_slice %25 {offsets = [0, 0], sizes = [2, 64], strides = [1, 1]} : vector<2x128xf32> to vector<2x64xf32>
    %33 = vector.extract_strided_slice %25 {offsets = [0, 64], sizes = [2, 64], strides = [1, 1]} : vector<2x128xf32> to vector<2x64xf32>
    %34 = vector.extract_strided_slice %31 {offsets = [0, 0], sizes = [2, 64], strides = [1, 1]} : vector<2x128xf32> to vector<2x64xf32>
    %35 = vector.extract_strided_slice %30 {offsets = [0, 64], sizes = [2, 64], strides = [1, 1]} : vector<2x128xf32> to vector<2x64xf32>
    %36 = arith.mulf %33, %10 : vector<2x64xf32>
    %37 = arith.mulf %32, %34 : vector<2x64xf32>
    %38 = arith.addf %36, %37 : vector<2x64xf32>
    %39 = math.tanh %38 : vector<2x64xf32>
    %40 = arith.mulf %35, %39 : vector<2x64xf32>
    %41 = arith.truncf %40 : vector<2x64xf32> to vector<2x64xbf16>
    %c0_20 = arith.constant 0 : index
    %c0_21 = arith.constant 0 : index
    %42 = vector.load %arg4[%c0_20, %c0_21] : memref<64x256xbf16, #tpu.memory_space<vmem>>, vector<64x256xbf16>
    %cst_22 = arith.constant dense<0.000000e+00> : vector<2x256xf32>
    %43 = tpu.matmul %41, %42, %cst_22 {dimension_numbers = #tpu.dot_dimension_numbers<[1], [0], [0], [1], [0, 0, 1, 1], [], []>} : vector<2x64xbf16>, vector<64x256xbf16>, vector<2x256xf32> -> vector<2x256xf32>
    %44 = arith.addf %43, %16 : vector<2x256xf32>
    %45 = arith.addf %44, %9 : vector<2x256xf32>
    %46 = vector.extract_strided_slice %45 {offsets = [0, 0], sizes = [2, 128], strides = [1, 1]} : vector<2x256xf32> to vector<2x128xf32>
    %47 = vector.extract_strided_slice %45 {offsets = [0, 128], sizes = [2, 128], strides = [1, 1]} : vector<2x256xf32> to vector<2x128xf32>
    %48 = arith.negf %46 : vector<2x128xf32>
    %49 = math.exp %48 : vector<2x128xf32>
    %cst_23 = arith.constant 1.000000e+00 : f32
    %50 = vector.broadcast %cst_23 : f32 to vector<2x128xf32>
    %51 = arith.addf %50, %49 : vector<2x128xf32>
    %52 = arith.divf %50, %51 : vector<2x128xf32>
    %53 = arith.negf %47 : vector<2x128xf32>
    %54 = math.exp %53 : vector<2x128xf32>
    %cst_24 = arith.constant 1.000000e+00 : f32
    %55 = vector.broadcast %cst_24 : f32 to vector<2x128xf32>
    %56 = arith.addf %55, %54 : vector<2x128xf32>
    %57 = arith.divf %55, %56 : vector<2x128xf32>
    %58 = math.tanh %47 : vector<2x128xf32>
    %59 = vector.extract_strided_slice %52 {offsets = [0, 0], sizes = [2, 64], strides = [1, 1]} : vector<2x128xf32> to vector<2x64xf32>
    %60 = vector.extract_strided_slice %52 {offsets = [0, 64], sizes = [2, 64], strides = [1, 1]} : vector<2x128xf32> to vector<2x64xf32>
    %61 = vector.extract_strided_slice %58 {offsets = [0, 0], sizes = [2, 64], strides = [1, 1]} : vector<2x128xf32> to vector<2x64xf32>
    %62 = vector.extract_strided_slice %57 {offsets = [0, 64], sizes = [2, 64], strides = [1, 1]} : vector<2x128xf32> to vector<2x64xf32>
    %63 = arith.mulf %60, %10 : vector<2x64xf32>
    %64 = arith.mulf %59, %61 : vector<2x64xf32>
    %65 = arith.addf %63, %64 : vector<2x64xf32>
    %66 = math.tanh %65 : vector<2x64xf32>
    %67 = arith.mulf %62, %66 : vector<2x64xf32>
    %68 = arith.truncf %40 : vector<2x64xf32> to vector<2x64xbf16>
    %c0_25 = arith.constant 0 : index
    %c0_26 = arith.constant 0 : index
    %69 = vector.load %arg3[%c0_25, %c0_26] : memref<64x256xbf16, #tpu.memory_space<vmem>>, vector<64x256xbf16>
    %cst_27 = arith.constant dense<0.000000e+00> : vector<2x256xf32>
    %70 = tpu.matmul %68, %69, %cst_27 {dimension_numbers = #tpu.dot_dimension_numbers<[1], [0], [0], [1], [0, 0, 1, 1], [], []>} : vector<2x64xbf16>, vector<64x256xbf16>, vector<2x256xf32> -> vector<2x256xf32>
    %71 = arith.truncf %67 : vector<2x64xf32> to vector<2x64xbf16>
    %c0_28 = arith.constant 0 : index
    %c0_29 = arith.constant 0 : index
    %72 = vector.load %arg5[%c0_28, %c0_29] : memref<64x256xbf16, #tpu.memory_space<vmem>>, vector<64x256xbf16>
    %cst_30 = arith.constant dense<0.000000e+00> : vector<2x256xf32>
    %73 = tpu.matmul %71, %72, %cst_30 {dimension_numbers = #tpu.dot_dimension_numbers<[1], [0], [0], [1], [0, 0, 1, 1], [], []>} : vector<2x64xbf16>, vector<64x256xbf16>, vector<2x256xf32> -> vector<2x256xf32>
    %c2 = arith.constant 2 : index
    %c0_31 = arith.constant 0 : index
    %74 = vector.load %arg10[%c2, %c0_31] : memref<16x256xf32, #tpu.memory_space<vmem>>, vector<2x256xf32>
    %75 = arith.addf %74, %70 : vector<2x256xf32>
    %76 = vector.extract_strided_slice %75 {offsets = [0, 0], sizes = [2, 128], strides = [1, 1]} : vector<2x256xf32> to vector<2x128xf32>
    %77 = vector.extract_strided_slice %75 {offsets = [0, 128], sizes = [2, 128], strides = [1, 1]} : vector<2x256xf32> to vector<2x128xf32>
    %78 = arith.negf %76 : vector<2x128xf32>
    %79 = math.exp %78 : vector<2x128xf32>
    %cst_32 = arith.constant 1.000000e+00 : f32
    %80 = vector.broadcast %cst_32 : f32 to vector<2x128xf32>
    %81 = arith.addf %80, %79 : vector<2x128xf32>
    %82 = arith.divf %80, %81 : vector<2x128xf32>
    %83 = arith.negf %77 : vector<2x128xf32>
    %84 = math.exp %83 : vector<2x128xf32>
    %cst_33 = arith.constant 1.000000e+00 : f32
    %85 = vector.broadcast %cst_33 : f32 to vector<2x128xf32>
    %86 = arith.addf %85, %84 : vector<2x128xf32>
    %87 = arith.divf %85, %86 : vector<2x128xf32>
    %88 = math.tanh %77 : vector<2x128xf32>
    %89 = vector.extract_strided_slice %82 {offsets = [0, 0], sizes = [2, 64], strides = [1, 1]} : vector<2x128xf32> to vector<2x64xf32>
    %90 = vector.extract_strided_slice %82 {offsets = [0, 64], sizes = [2, 64], strides = [1, 1]} : vector<2x128xf32> to vector<2x64xf32>
    %91 = vector.extract_strided_slice %88 {offsets = [0, 0], sizes = [2, 64], strides = [1, 1]} : vector<2x128xf32> to vector<2x64xf32>
    %92 = vector.extract_strided_slice %87 {offsets = [0, 64], sizes = [2, 64], strides = [1, 1]} : vector<2x128xf32> to vector<2x64xf32>
    %93 = arith.mulf %90, %38 : vector<2x64xf32>
    %94 = arith.mulf %89, %91 : vector<2x64xf32>
    %95 = arith.addf %93, %94 : vector<2x64xf32>
    %96 = math.tanh %95 : vector<2x64xf32>
    %97 = arith.mulf %92, %96 : vector<2x64xf32>
    %98 = arith.truncf %97 : vector<2x64xf32> to vector<2x64xbf16>
    %c0_34 = arith.constant 0 : index
    %c0_35 = arith.constant 0 : index
    %99 = vector.load %arg4[%c0_34, %c0_35] : memref<64x256xbf16, #tpu.memory_space<vmem>>, vector<64x256xbf16>
    %cst_36 = arith.constant dense<0.000000e+00> : vector<2x256xf32>
    %100 = tpu.matmul %98, %99, %cst_36 {dimension_numbers = #tpu.dot_dimension_numbers<[1], [0], [0], [1], [0, 0, 1, 1], [], []>} : vector<2x64xbf16>, vector<64x256xbf16>, vector<2x256xf32> -> vector<2x256xf32>
    %101 = arith.addf %100, %73 : vector<2x256xf32>
    %102 = arith.addf %101, %9 : vector<2x256xf32>
    %103 = vector.extract_strided_slice %102 {offsets = [0, 0], sizes = [2, 128], strides = [1, 1]} : vector<2x256xf32> to vector<2x128xf32>
    %104 = vector.extract_strided_slice %102 {offsets = [0, 128], sizes = [2, 128], strides = [1, 1]} : vector<2x256xf32> to vector<2x128xf32>
    %105 = arith.negf %103 : vector<2x128xf32>
    %106 = math.exp %105 : vector<2x128xf32>
    %cst_37 = arith.constant 1.000000e+00 : f32
    %107 = vector.broadcast %cst_37 : f32 to vector<2x128xf32>
    %108 = arith.addf %107, %106 : vector<2x128xf32>
    %109 = arith.divf %107, %108 : vector<2x128xf32>
    %110 = arith.negf %104 : vector<2x128xf32>
    %111 = math.exp %110 : vector<2x128xf32>
    %cst_38 = arith.constant 1.000000e+00 : f32
    %112 = vector.broadcast %cst_38 : f32 to vector<2x128xf32>
    %113 = arith.addf %112, %111 : vector<2x128xf32>
    %114 = arith.divf %112, %113 : vector<2x128xf32>
    %115 = math.tanh %104 : vector<2x128xf32>
    %116 = vector.extract_strided_slice %109 {offsets = [0, 0], sizes = [2, 64], strides = [1, 1]} : vector<2x128xf32> to vector<2x64xf32>
    %117 = vector.extract_strided_slice %109 {offsets = [0, 64], sizes = [2, 64], strides = [1, 1]} : vector<2x128xf32> to vector<2x64xf32>
    %118 = vector.extract_strided_slice %115 {offsets = [0, 0], sizes = [2, 64], strides = [1, 1]} : vector<2x128xf32> to vector<2x64xf32>
    %119 = vector.extract_strided_slice %114 {offsets = [0, 64], sizes = [2, 64], strides = [1, 1]} : vector<2x128xf32> to vector<2x64xf32>
    %120 = arith.mulf %117, %65 : vector<2x64xf32>
    %121 = arith.mulf %116, %118 : vector<2x64xf32>
    %122 = arith.addf %120, %121 : vector<2x64xf32>
    %123 = math.tanh %122 : vector<2x64xf32>
    %124 = arith.mulf %119, %123 : vector<2x64xf32>
    %125 = arith.truncf %97 : vector<2x64xf32> to vector<2x64xbf16>
    %c0_39 = arith.constant 0 : index
    %c0_40 = arith.constant 0 : index
    %126 = vector.load %arg3[%c0_39, %c0_40] : memref<64x256xbf16, #tpu.memory_space<vmem>>, vector<64x256xbf16>
    %cst_41 = arith.constant dense<0.000000e+00> : vector<2x256xf32>
    %127 = tpu.matmul %125, %126, %cst_41 {dimension_numbers = #tpu.dot_dimension_numbers<[1], [0], [0], [1], [0, 0, 1, 1], [], []>} : vector<2x64xbf16>, vector<64x256xbf16>, vector<2x256xf32> -> vector<2x256xf32>
    %128 = arith.truncf %124 : vector<2x64xf32> to vector<2x64xbf16>
    %c0_42 = arith.constant 0 : index
    %c0_43 = arith.constant 0 : index
    %129 = vector.load %arg5[%c0_42, %c0_43] : memref<64x256xbf16, #tpu.memory_space<vmem>>, vector<64x256xbf16>
    %cst_44 = arith.constant dense<0.000000e+00> : vector<2x256xf32>
    %130 = tpu.matmul %128, %129, %cst_44 {dimension_numbers = #tpu.dot_dimension_numbers<[1], [0], [0], [1], [0, 0, 1, 1], [], []>} : vector<2x64xbf16>, vector<64x256xbf16>, vector<2x256xf32> -> vector<2x256xf32>
    %c4 = arith.constant 4 : index
    %c0_45 = arith.constant 0 : index
    %131 = vector.load %arg10[%c4, %c0_45] : memref<16x256xf32, #tpu.memory_space<vmem>>, vector<2x256xf32>
    %132 = arith.addf %131, %127 : vector<2x256xf32>
    %133 = vector.extract_strided_slice %132 {offsets = [0, 0], sizes = [2, 128], strides = [1, 1]} : vector<2x256xf32> to vector<2x128xf32>
    %134 = vector.extract_strided_slice %132 {offsets = [0, 128], sizes = [2, 128], strides = [1, 1]} : vector<2x256xf32> to vector<2x128xf32>
    %135 = arith.negf %133 : vector<2x128xf32>
    %136 = math.exp %135 : vector<2x128xf32>
    %cst_46 = arith.constant 1.000000e+00 : f32
    %137 = vector.broadcast %cst_46 : f32 to vector<2x128xf32>
    %138 = arith.addf %137, %136 : vector<2x128xf32>
    %139 = arith.divf %137, %138 : vector<2x128xf32>
    %140 = arith.negf %134 : vector<2x128xf32>
    %141 = math.exp %140 : vector<2x128xf32>
    %cst_47 = arith.constant 1.000000e+00 : f32
    %142 = vector.broadcast %cst_47 : f32 to vector<2x128xf32>
    %143 = arith.addf %142, %141 : vector<2x128xf32>
    %144 = arith.divf %142, %143 : vector<2x128xf32>
    %145 = math.tanh %134 : vector<2x128xf32>
    %146 = vector.extract_strided_slice %139 {offsets = [0, 0], sizes = [2, 64], strides = [1, 1]} : vector<2x128xf32> to vector<2x64xf32>
    %147 = vector.extract_strided_slice %139 {offsets = [0, 64], sizes = [2, 64], strides = [1, 1]} : vector<2x128xf32> to vector<2x64xf32>
    %148 = vector.extract_strided_slice %145 {offsets = [0, 0], sizes = [2, 64], strides = [1, 1]} : vector<2x128xf32> to vector<2x64xf32>
    %149 = vector.extract_strided_slice %144 {offsets = [0, 64], sizes = [2, 64], strides = [1, 1]} : vector<2x128xf32> to vector<2x64xf32>
    %150 = arith.mulf %147, %95 : vector<2x64xf32>
    %151 = arith.mulf %146, %148 : vector<2x64xf32>
    %152 = arith.addf %150, %151 : vector<2x64xf32>
    %153 = math.tanh %152 : vector<2x64xf32>
    %154 = arith.mulf %149, %153 : vector<2x64xf32>
    %155 = arith.truncf %154 : vector<2x64xf32> to vector<2x64xbf16>
    %c0_48 = arith.constant 0 : index
    %c0_49 = arith.constant 0 : index
    %156 = vector.load %arg4[%c0_48, %c0_49] : memref<64x256xbf16, #tpu.memory_space<vmem>>, vector<64x256xbf16>
    %cst_50 = arith.constant dense<0.000000e+00> : vector<2x256xf32>
    %157 = tpu.matmul %155, %156, %cst_50 {dimension_numbers = #tpu.dot_dimension_numbers<[1], [0], [0], [1], [0, 0, 1, 1], [], []>} : vector<2x64xbf16>, vector<64x256xbf16>, vector<2x256xf32> -> vector<2x256xf32>
    %158 = arith.addf %157, %130 : vector<2x256xf32>
    %159 = arith.addf %158, %9 : vector<2x256xf32>
    %160 = vector.extract_strided_slice %159 {offsets = [0, 0], sizes = [2, 128], strides = [1, 1]} : vector<2x256xf32> to vector<2x128xf32>
    %161 = vector.extract_strided_slice %159 {offsets = [0, 128], sizes = [2, 128], strides = [1, 1]} : vector<2x256xf32> to vector<2x128xf32>
    %162 = arith.negf %160 : vector<2x128xf32>
    %163 = math.exp %162 : vector<2x128xf32>
    %cst_51 = arith.constant 1.000000e+00 : f32
    %164 = vector.broadcast %cst_51 : f32 to vector<2x128xf32>
    %165 = arith.addf %164, %163 : vector<2x128xf32>
    %166 = arith.divf %164, %165 : vector<2x128xf32>
    %167 = arith.negf %161 : vector<2x128xf32>
    %168 = math.exp %167 : vector<2x128xf32>
    %cst_52 = arith.constant 1.000000e+00 : f32
    %169 = vector.broadcast %cst_52 : f32 to vector<2x128xf32>
    %170 = arith.addf %169, %168 : vector<2x128xf32>
    %171 = arith.divf %169, %170 : vector<2x128xf32>
    %172 = math.tanh %161 : vector<2x128xf32>
    %173 = vector.extract_strided_slice %166 {offsets = [0, 0], sizes = [2, 64], strides = [1, 1]} : vector<2x128xf32> to vector<2x64xf32>
    %174 = vector.extract_strided_slice %166 {offsets = [0, 64], sizes = [2, 64], strides = [1, 1]} : vector<2x128xf32> to vector<2x64xf32>
    %175 = vector.extract_strided_slice %172 {offsets = [0, 0], sizes = [2, 64], strides = [1, 1]} : vector<2x128xf32> to vector<2x64xf32>
    %176 = vector.extract_strided_slice %171 {offsets = [0, 64], sizes = [2, 64], strides = [1, 1]} : vector<2x128xf32> to vector<2x64xf32>
    %177 = arith.mulf %174, %122 : vector<2x64xf32>
    %178 = arith.mulf %173, %175 : vector<2x64xf32>
    %179 = arith.addf %177, %178 : vector<2x64xf32>
    %180 = math.tanh %179 : vector<2x64xf32>
    %181 = arith.mulf %176, %180 : vector<2x64xf32>
    %182 = arith.truncf %154 : vector<2x64xf32> to vector<2x64xbf16>
    %c0_53 = arith.constant 0 : index
    %c0_54 = arith.constant 0 : index
    %183 = vector.load %arg3[%c0_53, %c0_54] : memref<64x256xbf16, #tpu.memory_space<vmem>>, vector<64x256xbf16>
    %cst_55 = arith.constant dense<0.000000e+00> : vector<2x256xf32>
    %184 = tpu.matmul %182, %183, %cst_55 {dimension_numbers = #tpu.dot_dimension_numbers<[1], [0], [0], [1], [0, 0, 1, 1], [], []>} : vector<2x64xbf16>, vector<64x256xbf16>, vector<2x256xf32> -> vector<2x256xf32>
    %185 = arith.truncf %181 : vector<2x64xf32> to vector<2x64xbf16>
    %c0_56 = arith.constant 0 : index
    %c0_57 = arith.constant 0 : index
    %186 = vector.load %arg5[%c0_56, %c0_57] : memref<64x256xbf16, #tpu.memory_space<vmem>>, vector<64x256xbf16>
    %cst_58 = arith.constant dense<0.000000e+00> : vector<2x256xf32>
    %187 = tpu.matmul %185, %186, %cst_58 {dimension_numbers = #tpu.dot_dimension_numbers<[1], [0], [0], [1], [0, 0, 1, 1], [], []>} : vector<2x64xbf16>, vector<64x256xbf16>, vector<2x256xf32> -> vector<2x256xf32>
    %c6 = arith.constant 6 : index
    %c0_59 = arith.constant 0 : index
    %188 = vector.load %arg10[%c6, %c0_59] : memref<16x256xf32, #tpu.memory_space<vmem>>, vector<2x256xf32>
    %189 = arith.addf %188, %184 : vector<2x256xf32>
    %190 = vector.extract_strided_slice %189 {offsets = [0, 0], sizes = [2, 128], strides = [1, 1]} : vector<2x256xf32> to vector<2x128xf32>
    %191 = vector.extract_strided_slice %189 {offsets = [0, 128], sizes = [2, 128], strides = [1, 1]} : vector<2x256xf32> to vector<2x128xf32>
    %192 = arith.negf %190 : vector<2x128xf32>
    %193 = math.exp %192 : vector<2x128xf32>
    %cst_60 = arith.constant 1.000000e+00 : f32
    %194 = vector.broadcast %cst_60 : f32 to vector<2x128xf32>
    %195 = arith.addf %194, %193 : vector<2x128xf32>
    %196 = arith.divf %194, %195 : vector<2x128xf32>
    %197 = arith.negf %191 : vector<2x128xf32>
    %198 = math.exp %197 : vector<2x128xf32>
    %cst_61 = arith.constant 1.000000e+00 : f32
    %199 = vector.broadcast %cst_61 : f32 to vector<2x128xf32>
    %200 = arith.addf %199, %198 : vector<2x128xf32>
    %201 = arith.divf %199, %200 : vector<2x128xf32>
    %202 = math.tanh %191 : vector<2x128xf32>
    %203 = vector.extract_strided_slice %196 {offsets = [0, 0], sizes = [2, 64], strides = [1, 1]} : vector<2x128xf32> to vector<2x64xf32>
    %204 = vector.extract_strided_slice %196 {offsets = [0, 64], sizes = [2, 64], strides = [1, 1]} : vector<2x128xf32> to vector<2x64xf32>
    %205 = vector.extract_strided_slice %202 {offsets = [0, 0], sizes = [2, 64], strides = [1, 1]} : vector<2x128xf32> to vector<2x64xf32>
    %206 = vector.extract_strided_slice %201 {offsets = [0, 64], sizes = [2, 64], strides = [1, 1]} : vector<2x128xf32> to vector<2x64xf32>
    %207 = arith.mulf %204, %152 : vector<2x64xf32>
    %208 = arith.mulf %203, %205 : vector<2x64xf32>
    %209 = arith.addf %207, %208 : vector<2x64xf32>
    %210 = math.tanh %209 : vector<2x64xf32>
    %211 = arith.mulf %206, %210 : vector<2x64xf32>
    %212 = arith.truncf %211 : vector<2x64xf32> to vector<2x64xbf16>
    %c0_62 = arith.constant 0 : index
    %c0_63 = arith.constant 0 : index
    %213 = vector.load %arg4[%c0_62, %c0_63] : memref<64x256xbf16, #tpu.memory_space<vmem>>, vector<64x256xbf16>
    %cst_64 = arith.constant dense<0.000000e+00> : vector<2x256xf32>
    %214 = tpu.matmul %212, %213, %cst_64 {dimension_numbers = #tpu.dot_dimension_numbers<[1], [0], [0], [1], [0, 0, 1, 1], [], []>} : vector<2x64xbf16>, vector<64x256xbf16>, vector<2x256xf32> -> vector<2x256xf32>
    %215 = arith.addf %214, %187 : vector<2x256xf32>
    %216 = arith.addf %215, %9 : vector<2x256xf32>
    %217 = vector.extract_strided_slice %216 {offsets = [0, 0], sizes = [2, 128], strides = [1, 1]} : vector<2x256xf32> to vector<2x128xf32>
    %218 = vector.extract_strided_slice %216 {offsets = [0, 128], sizes = [2, 128], strides = [1, 1]} : vector<2x256xf32> to vector<2x128xf32>
    %219 = arith.negf %217 : vector<2x128xf32>
    %220 = math.exp %219 : vector<2x128xf32>
    %cst_65 = arith.constant 1.000000e+00 : f32
    %221 = vector.broadcast %cst_65 : f32 to vector<2x128xf32>
    %222 = arith.addf %221, %220 : vector<2x128xf32>
    %223 = arith.divf %221, %222 : vector<2x128xf32>
    %224 = arith.negf %218 : vector<2x128xf32>
    %225 = math.exp %224 : vector<2x128xf32>
    %cst_66 = arith.constant 1.000000e+00 : f32
    %226 = vector.broadcast %cst_66 : f32 to vector<2x128xf32>
    %227 = arith.addf %226, %225 : vector<2x128xf32>
    %228 = arith.divf %226, %227 : vector<2x128xf32>
    %229 = math.tanh %218 : vector<2x128xf32>
    %230 = vector.extract_strided_slice %223 {offsets = [0, 0], sizes = [2, 64], strides = [1, 1]} : vector<2x128xf32> to vector<2x64xf32>
    %231 = vector.extract_strided_slice %223 {offsets = [0, 64], sizes = [2, 64], strides = [1, 1]} : vector<2x128xf32> to vector<2x64xf32>
    %232 = vector.extract_strided_slice %229 {offsets = [0, 0], sizes = [2, 64], strides = [1, 1]} : vector<2x128xf32> to vector<2x64xf32>
    %233 = vector.extract_strided_slice %228 {offsets = [0, 64], sizes = [2, 64], strides = [1, 1]} : vector<2x128xf32> to vector<2x64xf32>
    %234 = arith.mulf %231, %179 : vector<2x64xf32>
    %235 = arith.mulf %230, %232 : vector<2x64xf32>
    %236 = arith.addf %234, %235 : vector<2x64xf32>
    %237 = math.tanh %236 : vector<2x64xf32>
    %238 = arith.mulf %233, %237 : vector<2x64xf32>
    %239 = arith.truncf %211 : vector<2x64xf32> to vector<2x64xbf16>
    %c0_67 = arith.constant 0 : index
    %c0_68 = arith.constant 0 : index
    %240 = vector.load %arg3[%c0_67, %c0_68] : memref<64x256xbf16, #tpu.memory_space<vmem>>, vector<64x256xbf16>
    %cst_69 = arith.constant dense<0.000000e+00> : vector<2x256xf32>
    %241 = tpu.matmul %239, %240, %cst_69 {dimension_numbers = #tpu.dot_dimension_numbers<[1], [0], [0], [1], [0, 0, 1, 1], [], []>} : vector<2x64xbf16>, vector<64x256xbf16>, vector<2x256xf32> -> vector<2x256xf32>
    %242 = arith.truncf %238 : vector<2x64xf32> to vector<2x64xbf16>
    %c0_70 = arith.constant 0 : index
    %c0_71 = arith.constant 0 : index
    %243 = vector.load %arg5[%c0_70, %c0_71] : memref<64x256xbf16, #tpu.memory_space<vmem>>, vector<64x256xbf16>
    %cst_72 = arith.constant dense<0.000000e+00> : vector<2x256xf32>
    %244 = tpu.matmul %242, %243, %cst_72 {dimension_numbers = #tpu.dot_dimension_numbers<[1], [0], [0], [1], [0, 0, 1, 1], [], []>} : vector<2x64xbf16>, vector<64x256xbf16>, vector<2x256xf32> -> vector<2x256xf32>
    %c8 = arith.constant 8 : index
    %c0_73 = arith.constant 0 : index
    %245 = vector.load %arg10[%c8, %c0_73] : memref<16x256xf32, #tpu.memory_space<vmem>>, vector<2x256xf32>
    %246 = arith.addf %245, %241 : vector<2x256xf32>
    %247 = vector.extract_strided_slice %246 {offsets = [0, 0], sizes = [2, 128], strides = [1, 1]} : vector<2x256xf32> to vector<2x128xf32>
    %248 = vector.extract_strided_slice %246 {offsets = [0, 128], sizes = [2, 128], strides = [1, 1]} : vector<2x256xf32> to vector<2x128xf32>
    %249 = arith.negf %247 : vector<2x128xf32>
    %250 = math.exp %249 : vector<2x128xf32>
    %cst_74 = arith.constant 1.000000e+00 : f32
    %251 = vector.broadcast %cst_74 : f32 to vector<2x128xf32>
    %252 = arith.addf %251, %250 : vector<2x128xf32>
    %253 = arith.divf %251, %252 : vector<2x128xf32>
    %254 = arith.negf %248 : vector<2x128xf32>
    %255 = math.exp %254 : vector<2x128xf32>
    %cst_75 = arith.constant 1.000000e+00 : f32
    %256 = vector.broadcast %cst_75 : f32 to vector<2x128xf32>
    %257 = arith.addf %256, %255 : vector<2x128xf32>
    %258 = arith.divf %256, %257 : vector<2x128xf32>
    %259 = math.tanh %248 : vector<2x128xf32>
    %260 = vector.extract_strided_slice %253 {offsets = [0, 0], sizes = [2, 64], strides = [1, 1]} : vector<2x128xf32> to vector<2x64xf32>
    %261 = vector.extract_strided_slice %253 {offsets = [0, 64], sizes = [2, 64], strides = [1, 1]} : vector<2x128xf32> to vector<2x64xf32>
    %262 = vector.extract_strided_slice %259 {offsets = [0, 0], sizes = [2, 64], strides = [1, 1]} : vector<2x128xf32> to vector<2x64xf32>
    %263 = vector.extract_strided_slice %258 {offsets = [0, 64], sizes = [2, 64], strides = [1, 1]} : vector<2x128xf32> to vector<2x64xf32>
    %264 = arith.mulf %261, %209 : vector<2x64xf32>
    %265 = arith.mulf %260, %262 : vector<2x64xf32>
    %266 = arith.addf %264, %265 : vector<2x64xf32>
    %267 = math.tanh %266 : vector<2x64xf32>
    %268 = arith.mulf %263, %267 : vector<2x64xf32>
    %269 = arith.truncf %268 : vector<2x64xf32> to vector<2x64xbf16>
    %c0_76 = arith.constant 0 : index
    %c0_77 = arith.constant 0 : index
    %270 = vector.load %arg4[%c0_76, %c0_77] : memref<64x256xbf16, #tpu.memory_space<vmem>>, vector<64x256xbf16>
    %cst_78 = arith.constant dense<0.000000e+00> : vector<2x256xf32>
    %271 = tpu.matmul %269, %270, %cst_78 {dimension_numbers = #tpu.dot_dimension_numbers<[1], [0], [0], [1], [0, 0, 1, 1], [], []>} : vector<2x64xbf16>, vector<64x256xbf16>, vector<2x256xf32> -> vector<2x256xf32>
    %272 = arith.addf %271, %244 : vector<2x256xf32>
    %273 = arith.addf %272, %9 : vector<2x256xf32>
    %274 = vector.extract_strided_slice %273 {offsets = [0, 0], sizes = [2, 128], strides = [1, 1]} : vector<2x256xf32> to vector<2x128xf32>
    %275 = vector.extract_strided_slice %273 {offsets = [0, 128], sizes = [2, 128], strides = [1, 1]} : vector<2x256xf32> to vector<2x128xf32>
    %276 = arith.negf %274 : vector<2x128xf32>
    %277 = math.exp %276 : vector<2x128xf32>
    %cst_79 = arith.constant 1.000000e+00 : f32
    %278 = vector.broadcast %cst_79 : f32 to vector<2x128xf32>
    %279 = arith.addf %278, %277 : vector<2x128xf32>
    %280 = arith.divf %278, %279 : vector<2x128xf32>
    %281 = arith.negf %275 : vector<2x128xf32>
    %282 = math.exp %281 : vector<2x128xf32>
    %cst_80 = arith.constant 1.000000e+00 : f32
    %283 = vector.broadcast %cst_80 : f32 to vector<2x128xf32>
    %284 = arith.addf %283, %282 : vector<2x128xf32>
    %285 = arith.divf %283, %284 : vector<2x128xf32>
    %286 = math.tanh %275 : vector<2x128xf32>
    %287 = vector.extract_strided_slice %280 {offsets = [0, 0], sizes = [2, 64], strides = [1, 1]} : vector<2x128xf32> to vector<2x64xf32>
    %288 = vector.extract_strided_slice %280 {offsets = [0, 64], sizes = [2, 64], strides = [1, 1]} : vector<2x128xf32> to vector<2x64xf32>
    %289 = vector.extract_strided_slice %286 {offsets = [0, 0], sizes = [2, 64], strides = [1, 1]} : vector<2x128xf32> to vector<2x64xf32>
    %290 = vector.extract_strided_slice %285 {offsets = [0, 64], sizes = [2, 64], strides = [1, 1]} : vector<2x128xf32> to vector<2x64xf32>
    %291 = arith.mulf %288, %236 : vector<2x64xf32>
    %292 = arith.mulf %287, %289 : vector<2x64xf32>
    %293 = arith.addf %291, %292 : vector<2x64xf32>
    %294 = math.tanh %293 : vector<2x64xf32>
    %295 = arith.mulf %290, %294 : vector<2x64xf32>
    %296 = arith.truncf %268 : vector<2x64xf32> to vector<2x64xbf16>
    %c0_81 = arith.constant 0 : index
    %c0_82 = arith.constant 0 : index
    %297 = vector.load %arg3[%c0_81, %c0_82] : memref<64x256xbf16, #tpu.memory_space<vmem>>, vector<64x256xbf16>
    %cst_83 = arith.constant dense<0.000000e+00> : vector<2x256xf32>
    %298 = tpu.matmul %296, %297, %cst_83 {dimension_numbers = #tpu.dot_dimension_numbers<[1], [0], [0], [1], [0, 0, 1, 1], [], []>} : vector<2x64xbf16>, vector<64x256xbf16>, vector<2x256xf32> -> vector<2x256xf32>
    %299 = arith.truncf %295 : vector<2x64xf32> to vector<2x64xbf16>
    %c0_84 = arith.constant 0 : index
    %c0_85 = arith.constant 0 : index
    %300 = vector.load %arg5[%c0_84, %c0_85] : memref<64x256xbf16, #tpu.memory_space<vmem>>, vector<64x256xbf16>
    %cst_86 = arith.constant dense<0.000000e+00> : vector<2x256xf32>
    %301 = tpu.matmul %299, %300, %cst_86 {dimension_numbers = #tpu.dot_dimension_numbers<[1], [0], [0], [1], [0, 0, 1, 1], [], []>} : vector<2x64xbf16>, vector<64x256xbf16>, vector<2x256xf32> -> vector<2x256xf32>
    %c10 = arith.constant 10 : index
    %c0_87 = arith.constant 0 : index
    %302 = vector.load %arg10[%c10, %c0_87] : memref<16x256xf32, #tpu.memory_space<vmem>>, vector<2x256xf32>
    %303 = arith.addf %302, %298 : vector<2x256xf32>
    %304 = vector.extract_strided_slice %303 {offsets = [0, 0], sizes = [2, 128], strides = [1, 1]} : vector<2x256xf32> to vector<2x128xf32>
    %305 = vector.extract_strided_slice %303 {offsets = [0, 128], sizes = [2, 128], strides = [1, 1]} : vector<2x256xf32> to vector<2x128xf32>
    %306 = arith.negf %304 : vector<2x128xf32>
    %307 = math.exp %306 : vector<2x128xf32>
    %cst_88 = arith.constant 1.000000e+00 : f32
    %308 = vector.broadcast %cst_88 : f32 to vector<2x128xf32>
    %309 = arith.addf %308, %307 : vector<2x128xf32>
    %310 = arith.divf %308, %309 : vector<2x128xf32>
    %311 = arith.negf %305 : vector<2x128xf32>
    %312 = math.exp %311 : vector<2x128xf32>
    %cst_89 = arith.constant 1.000000e+00 : f32
    %313 = vector.broadcast %cst_89 : f32 to vector<2x128xf32>
    %314 = arith.addf %313, %312 : vector<2x128xf32>
    %315 = arith.divf %313, %314 : vector<2x128xf32>
    %316 = math.tanh %305 : vector<2x128xf32>
    %317 = vector.extract_strided_slice %310 {offsets = [0, 0], sizes = [2, 64], strides = [1, 1]} : vector<2x128xf32> to vector<2x64xf32>
    %318 = vector.extract_strided_slice %310 {offsets = [0, 64], sizes = [2, 64], strides = [1, 1]} : vector<2x128xf32> to vector<2x64xf32>
    %319 = vector.extract_strided_slice %316 {offsets = [0, 0], sizes = [2, 64], strides = [1, 1]} : vector<2x128xf32> to vector<2x64xf32>
    %320 = vector.extract_strided_slice %315 {offsets = [0, 64], sizes = [2, 64], strides = [1, 1]} : vector<2x128xf32> to vector<2x64xf32>
    %321 = arith.mulf %318, %266 : vector<2x64xf32>
    %322 = arith.mulf %317, %319 : vector<2x64xf32>
    %323 = arith.addf %321, %322 : vector<2x64xf32>
    %324 = math.tanh %323 : vector<2x64xf32>
    %325 = arith.mulf %320, %324 : vector<2x64xf32>
    %326 = arith.truncf %325 : vector<2x64xf32> to vector<2x64xbf16>
    %c0_90 = arith.constant 0 : index
    %c0_91 = arith.constant 0 : index
    %327 = vector.load %arg4[%c0_90, %c0_91] : memref<64x256xbf16, #tpu.memory_space<vmem>>, vector<64x256xbf16>
    %cst_92 = arith.constant dense<0.000000e+00> : vector<2x256xf32>
    %328 = tpu.matmul %326, %327, %cst_92 {dimension_numbers = #tpu.dot_dimension_numbers<[1], [0], [0], [1], [0, 0, 1, 1], [], []>} : vector<2x64xbf16>, vector<64x256xbf16>, vector<2x256xf32> -> vector<2x256xf32>
    %329 = arith.addf %328, %301 : vector<2x256xf32>
    %330 = arith.addf %329, %9 : vector<2x256xf32>
    %331 = vector.extract_strided_slice %330 {offsets = [0, 0], sizes = [2, 128], strides = [1, 1]} : vector<2x256xf32> to vector<2x128xf32>
    %332 = vector.extract_strided_slice %330 {offsets = [0, 128], sizes = [2, 128], strides = [1, 1]} : vector<2x256xf32> to vector<2x128xf32>
    %333 = arith.negf %331 : vector<2x128xf32>
    %334 = math.exp %333 : vector<2x128xf32>
    %cst_93 = arith.constant 1.000000e+00 : f32
    %335 = vector.broadcast %cst_93 : f32 to vector<2x128xf32>
    %336 = arith.addf %335, %334 : vector<2x128xf32>
    %337 = arith.divf %335, %336 : vector<2x128xf32>
    %338 = arith.negf %332 : vector<2x128xf32>
    %339 = math.exp %338 : vector<2x128xf32>
    %cst_94 = arith.constant 1.000000e+00 : f32
    %340 = vector.broadcast %cst_94 : f32 to vector<2x128xf32>
    %341 = arith.addf %340, %339 : vector<2x128xf32>
    %342 = arith.divf %340, %341 : vector<2x128xf32>
    %343 = math.tanh %332 : vector<2x128xf32>
    %344 = vector.extract_strided_slice %337 {offsets = [0, 0], sizes = [2, 64], strides = [1, 1]} : vector<2x128xf32> to vector<2x64xf32>
    %345 = vector.extract_strided_slice %337 {offsets = [0, 64], sizes = [2, 64], strides = [1, 1]} : vector<2x128xf32> to vector<2x64xf32>
    %346 = vector.extract_strided_slice %343 {offsets = [0, 0], sizes = [2, 64], strides = [1, 1]} : vector<2x128xf32> to vector<2x64xf32>
    %347 = vector.extract_strided_slice %342 {offsets = [0, 64], sizes = [2, 64], strides = [1, 1]} : vector<2x128xf32> to vector<2x64xf32>
    %348 = arith.mulf %345, %293 : vector<2x64xf32>
    %349 = arith.mulf %344, %346 : vector<2x64xf32>
    %350 = arith.addf %348, %349 : vector<2x64xf32>
    %351 = math.tanh %350 : vector<2x64xf32>
    %352 = arith.mulf %347, %351 : vector<2x64xf32>
    %353 = arith.truncf %325 : vector<2x64xf32> to vector<2x64xbf16>
    %c0_95 = arith.constant 0 : index
    %c0_96 = arith.constant 0 : index
    %354 = vector.load %arg3[%c0_95, %c0_96] : memref<64x256xbf16, #tpu.memory_space<vmem>>, vector<64x256xbf16>
    %cst_97 = arith.constant dense<0.000000e+00> : vector<2x256xf32>
    %355 = tpu.matmul %353, %354, %cst_97 {dimension_numbers = #tpu.dot_dimension_numbers<[1], [0], [0], [1], [0, 0, 1, 1], [], []>} : vector<2x64xbf16>, vector<64x256xbf16>, vector<2x256xf32> -> vector<2x256xf32>
    %356 = arith.truncf %352 : vector<2x64xf32> to vector<2x64xbf16>
    %c0_98 = arith.constant 0 : index
    %c0_99 = arith.constant 0 : index
    %357 = vector.load %arg5[%c0_98, %c0_99] : memref<64x256xbf16, #tpu.memory_space<vmem>>, vector<64x256xbf16>
    %cst_100 = arith.constant dense<0.000000e+00> : vector<2x256xf32>
    %358 = tpu.matmul %356, %357, %cst_100 {dimension_numbers = #tpu.dot_dimension_numbers<[1], [0], [0], [1], [0, 0, 1, 1], [], []>} : vector<2x64xbf16>, vector<64x256xbf16>, vector<2x256xf32> -> vector<2x256xf32>
    %c12 = arith.constant 12 : index
    %c0_101 = arith.constant 0 : index
    %359 = vector.load %arg10[%c12, %c0_101] : memref<16x256xf32, #tpu.memory_space<vmem>>, vector<2x256xf32>
    %360 = arith.addf %359, %355 : vector<2x256xf32>
    %361 = vector.extract_strided_slice %360 {offsets = [0, 0], sizes = [2, 128], strides = [1, 1]} : vector<2x256xf32> to vector<2x128xf32>
    %362 = vector.extract_strided_slice %360 {offsets = [0, 128], sizes = [2, 128], strides = [1, 1]} : vector<2x256xf32> to vector<2x128xf32>
    %363 = arith.negf %361 : vector<2x128xf32>
    %364 = math.exp %363 : vector<2x128xf32>
    %cst_102 = arith.constant 1.000000e+00 : f32
    %365 = vector.broadcast %cst_102 : f32 to vector<2x128xf32>
    %366 = arith.addf %365, %364 : vector<2x128xf32>
    %367 = arith.divf %365, %366 : vector<2x128xf32>
    %368 = arith.negf %362 : vector<2x128xf32>
    %369 = math.exp %368 : vector<2x128xf32>
    %cst_103 = arith.constant 1.000000e+00 : f32
    %370 = vector.broadcast %cst_103 : f32 to vector<2x128xf32>
    %371 = arith.addf %370, %369 : vector<2x128xf32>
    %372 = arith.divf %370, %371 : vector<2x128xf32>
    %373 = math.tanh %362 : vector<2x128xf32>
    %374 = vector.extract_strided_slice %367 {offsets = [0, 0], sizes = [2, 64], strides = [1, 1]} : vector<2x128xf32> to vector<2x64xf32>
    %375 = vector.extract_strided_slice %367 {offsets = [0, 64], sizes = [2, 64], strides = [1, 1]} : vector<2x128xf32> to vector<2x64xf32>
    %376 = vector.extract_strided_slice %373 {offsets = [0, 0], sizes = [2, 64], strides = [1, 1]} : vector<2x128xf32> to vector<2x64xf32>
    %377 = vector.extract_strided_slice %372 {offsets = [0, 64], sizes = [2, 64], strides = [1, 1]} : vector<2x128xf32> to vector<2x64xf32>
    %378 = arith.mulf %375, %323 : vector<2x64xf32>
    %379 = arith.mulf %374, %376 : vector<2x64xf32>
    %380 = arith.addf %378, %379 : vector<2x64xf32>
    %381 = math.tanh %380 : vector<2x64xf32>
    %382 = arith.mulf %377, %381 : vector<2x64xf32>
    %383 = arith.truncf %382 : vector<2x64xf32> to vector<2x64xbf16>
    %c0_104 = arith.constant 0 : index
    %c0_105 = arith.constant 0 : index
    %384 = vector.load %arg4[%c0_104, %c0_105] : memref<64x256xbf16, #tpu.memory_space<vmem>>, vector<64x256xbf16>
    %cst_106 = arith.constant dense<0.000000e+00> : vector<2x256xf32>
    %385 = tpu.matmul %383, %384, %cst_106 {dimension_numbers = #tpu.dot_dimension_numbers<[1], [0], [0], [1], [0, 0, 1, 1], [], []>} : vector<2x64xbf16>, vector<64x256xbf16>, vector<2x256xf32> -> vector<2x256xf32>
    %386 = arith.addf %385, %358 : vector<2x256xf32>
    %387 = arith.addf %386, %9 : vector<2x256xf32>
    %388 = vector.extract_strided_slice %387 {offsets = [0, 0], sizes = [2, 128], strides = [1, 1]} : vector<2x256xf32> to vector<2x128xf32>
    %389 = vector.extract_strided_slice %387 {offsets = [0, 128], sizes = [2, 128], strides = [1, 1]} : vector<2x256xf32> to vector<2x128xf32>
    %390 = arith.negf %388 : vector<2x128xf32>
    %391 = math.exp %390 : vector<2x128xf32>
    %cst_107 = arith.constant 1.000000e+00 : f32
    %392 = vector.broadcast %cst_107 : f32 to vector<2x128xf32>
    %393 = arith.addf %392, %391 : vector<2x128xf32>
    %394 = arith.divf %392, %393 : vector<2x128xf32>
    %395 = arith.negf %389 : vector<2x128xf32>
    %396 = math.exp %395 : vector<2x128xf32>
    %cst_108 = arith.constant 1.000000e+00 : f32
    %397 = vector.broadcast %cst_108 : f32 to vector<2x128xf32>
    %398 = arith.addf %397, %396 : vector<2x128xf32>
    %399 = arith.divf %397, %398 : vector<2x128xf32>
    %400 = math.tanh %389 : vector<2x128xf32>
    %401 = vector.extract_strided_slice %394 {offsets = [0, 0], sizes = [2, 64], strides = [1, 1]} : vector<2x128xf32> to vector<2x64xf32>
    %402 = vector.extract_strided_slice %394 {offsets = [0, 64], sizes = [2, 64], strides = [1, 1]} : vector<2x128xf32> to vector<2x64xf32>
    %403 = vector.extract_strided_slice %400 {offsets = [0, 0], sizes = [2, 64], strides = [1, 1]} : vector<2x128xf32> to vector<2x64xf32>
    %404 = vector.extract_strided_slice %399 {offsets = [0, 64], sizes = [2, 64], strides = [1, 1]} : vector<2x128xf32> to vector<2x64xf32>
    %405 = arith.mulf %402, %350 : vector<2x64xf32>
    %406 = arith.mulf %401, %403 : vector<2x64xf32>
    %407 = arith.addf %405, %406 : vector<2x64xf32>
    %408 = math.tanh %407 : vector<2x64xf32>
    %409 = arith.mulf %404, %408 : vector<2x64xf32>
    %410 = arith.truncf %382 : vector<2x64xf32> to vector<2x64xbf16>
    %c0_109 = arith.constant 0 : index
    %c0_110 = arith.constant 0 : index
    %411 = vector.load %arg3[%c0_109, %c0_110] : memref<64x256xbf16, #tpu.memory_space<vmem>>, vector<64x256xbf16>
    %cst_111 = arith.constant dense<0.000000e+00> : vector<2x256xf32>
    %412 = tpu.matmul %410, %411, %cst_111 {dimension_numbers = #tpu.dot_dimension_numbers<[1], [0], [0], [1], [0, 0, 1, 1], [], []>} : vector<2x64xbf16>, vector<64x256xbf16>, vector<2x256xf32> -> vector<2x256xf32>
    %413 = arith.truncf %409 : vector<2x64xf32> to vector<2x64xbf16>
    %c0_112 = arith.constant 0 : index
    %c0_113 = arith.constant 0 : index
    %414 = vector.load %arg5[%c0_112, %c0_113] : memref<64x256xbf16, #tpu.memory_space<vmem>>, vector<64x256xbf16>
    %cst_114 = arith.constant dense<0.000000e+00> : vector<2x256xf32>
    %415 = tpu.matmul %413, %414, %cst_114 {dimension_numbers = #tpu.dot_dimension_numbers<[1], [0], [0], [1], [0, 0, 1, 1], [], []>} : vector<2x64xbf16>, vector<64x256xbf16>, vector<2x256xf32> -> vector<2x256xf32>
    %c14 = arith.constant 14 : index
    %c0_115 = arith.constant 0 : index
    %416 = vector.load %arg10[%c14, %c0_115] : memref<16x256xf32, #tpu.memory_space<vmem>>, vector<2x256xf32>
    %417 = arith.addf %416, %412 : vector<2x256xf32>
    %418 = vector.extract_strided_slice %417 {offsets = [0, 0], sizes = [2, 128], strides = [1, 1]} : vector<2x256xf32> to vector<2x128xf32>
    %419 = vector.extract_strided_slice %417 {offsets = [0, 128], sizes = [2, 128], strides = [1, 1]} : vector<2x256xf32> to vector<2x128xf32>
    %420 = arith.negf %418 : vector<2x128xf32>
    %421 = math.exp %420 : vector<2x128xf32>
    %cst_116 = arith.constant 1.000000e+00 : f32
    %422 = vector.broadcast %cst_116 : f32 to vector<2x128xf32>
    %423 = arith.addf %422, %421 : vector<2x128xf32>
    %424 = arith.divf %422, %423 : vector<2x128xf32>
    %425 = arith.negf %419 : vector<2x128xf32>
    %426 = math.exp %425 : vector<2x128xf32>
    %cst_117 = arith.constant 1.000000e+00 : f32
    %427 = vector.broadcast %cst_117 : f32 to vector<2x128xf32>
    %428 = arith.addf %427, %426 : vector<2x128xf32>
    %429 = arith.divf %427, %428 : vector<2x128xf32>
    %430 = math.tanh %419 : vector<2x128xf32>
    %431 = vector.extract_strided_slice %424 {offsets = [0, 0], sizes = [2, 64], strides = [1, 1]} : vector<2x128xf32> to vector<2x64xf32>
    %432 = vector.extract_strided_slice %424 {offsets = [0, 64], sizes = [2, 64], strides = [1, 1]} : vector<2x128xf32> to vector<2x64xf32>
    %433 = vector.extract_strided_slice %430 {offsets = [0, 0], sizes = [2, 64], strides = [1, 1]} : vector<2x128xf32> to vector<2x64xf32>
    %434 = vector.extract_strided_slice %429 {offsets = [0, 64], sizes = [2, 64], strides = [1, 1]} : vector<2x128xf32> to vector<2x64xf32>
    %435 = arith.mulf %432, %380 : vector<2x64xf32>
    %436 = arith.mulf %431, %433 : vector<2x64xf32>
    %437 = arith.addf %435, %436 : vector<2x64xf32>
    %438 = math.tanh %437 : vector<2x64xf32>
    %439 = arith.mulf %434, %438 : vector<2x64xf32>
    %440 = arith.truncf %439 : vector<2x64xf32> to vector<2x64xbf16>
    %c0_118 = arith.constant 0 : index
    %c0_119 = arith.constant 0 : index
    %441 = vector.load %arg4[%c0_118, %c0_119] : memref<64x256xbf16, #tpu.memory_space<vmem>>, vector<64x256xbf16>
    %cst_120 = arith.constant dense<0.000000e+00> : vector<2x256xf32>
    %442 = tpu.matmul %440, %441, %cst_120 {dimension_numbers = #tpu.dot_dimension_numbers<[1], [0], [0], [1], [0, 0, 1, 1], [], []>} : vector<2x64xbf16>, vector<64x256xbf16>, vector<2x256xf32> -> vector<2x256xf32>
    %443 = arith.addf %442, %415 : vector<2x256xf32>
    %444 = arith.addf %443, %9 : vector<2x256xf32>
    %445 = vector.extract_strided_slice %444 {offsets = [0, 0], sizes = [2, 128], strides = [1, 1]} : vector<2x256xf32> to vector<2x128xf32>
    %446 = vector.extract_strided_slice %444 {offsets = [0, 128], sizes = [2, 128], strides = [1, 1]} : vector<2x256xf32> to vector<2x128xf32>
    %447 = arith.negf %445 : vector<2x128xf32>
    %448 = math.exp %447 : vector<2x128xf32>
    %cst_121 = arith.constant 1.000000e+00 : f32
    %449 = vector.broadcast %cst_121 : f32 to vector<2x128xf32>
    %450 = arith.addf %449, %448 : vector<2x128xf32>
    %451 = arith.divf %449, %450 : vector<2x128xf32>
    %452 = arith.negf %446 : vector<2x128xf32>
    %453 = math.exp %452 : vector<2x128xf32>
    %cst_122 = arith.constant 1.000000e+00 : f32
    %454 = vector.broadcast %cst_122 : f32 to vector<2x128xf32>
    %455 = arith.addf %454, %453 : vector<2x128xf32>
    %456 = arith.divf %454, %455 : vector<2x128xf32>
    %457 = math.tanh %446 : vector<2x128xf32>
    %458 = vector.extract_strided_slice %451 {offsets = [0, 0], sizes = [2, 64], strides = [1, 1]} : vector<2x128xf32> to vector<2x64xf32>
    %459 = vector.extract_strided_slice %451 {offsets = [0, 64], sizes = [2, 64], strides = [1, 1]} : vector<2x128xf32> to vector<2x64xf32>
    %460 = vector.extract_strided_slice %457 {offsets = [0, 0], sizes = [2, 64], strides = [1, 1]} : vector<2x128xf32> to vector<2x64xf32>
    %461 = vector.extract_strided_slice %456 {offsets = [0, 64], sizes = [2, 64], strides = [1, 1]} : vector<2x128xf32> to vector<2x64xf32>
    %462 = arith.mulf %459, %407 : vector<2x64xf32>
    %463 = arith.mulf %458, %460 : vector<2x64xf32>
    %464 = arith.addf %462, %463 : vector<2x64xf32>
    %465 = math.tanh %464 : vector<2x64xf32>
    %466 = arith.mulf %461, %465 : vector<2x64xf32>
    %467 = arith.truncf %466 : vector<2x64xf32> to vector<2x64xbf16>
    %c0_123 = arith.constant 0 : index
    %c0_124 = arith.constant 0 : index
    %468 = vector.load %arg7[%c0_123, %c0_124] : memref<64x3xbf16, #tpu.memory_space<vmem>>, vector<64x3xbf16>
    %cst_125 = arith.constant dense<0.000000e+00> : vector<2x3xf32>
    %469 = tpu.matmul %467, %468, %cst_125 {dimension_numbers = #tpu.dot_dimension_numbers<[1], [0], [0], [1], [0, 0, 1, 1], [], []>} : vector<2x64xbf16>, vector<64x3xbf16>, vector<2x3xf32> -> vector<2x3xf32>
    %c0_126 = arith.constant 0 : index
    %c0_127 = arith.constant 0 : index
    %470 = vector.load %arg8[%c0_126, %c0_127] : memref<1x3xf32, #tpu.memory_space<vmem>>, vector<1x3xf32>
    %471 = vector.broadcast %470 : vector<1x3xf32> to vector<2x3xf32>
    %472 = arith.addf %469, %471 : vector<2x3xf32>
    %c0_128 = arith.constant 0 : index
    %c0_129 = arith.constant 0 : index
    %473 = vector.load %arg9[%c0_128, %c0_129] : memref<2x3xf32, #tpu.memory_space<vmem>>, vector<2x3xf32>
    tpu.vector_store %arg9[%c0_128, %c0_129], %472 {strides = array<i32>} : memref<2x3xf32, #tpu.memory_space<vmem>>, vector<2x3xf32>,
    return
  }
}

</mosaic_0001>

<llo_original>
// kernel: lstm_predictor.1
$region0: #{lstm_predictor.1}
  #allocation0 [shape = 'u32[]', space=smem, size = 0x4, offset = 0x4, fixed_abs, tag = 'smem constant byte address 0x4 - core index']
  #allocation1 [shape = 'u32[144,128]{1,0:T(1,128)}', space=vmem, size = 0x12000, scoped, tag = 'internal scratch']
  #allocation2 [shape = 'f32[16,256]{1,0:T(8,128)}', space=vmem, size = 0x4000, scoped, tag = 'scratch operand']
  %s0 = inlined_call_operand.vmem [shape: f32[16,3], index: 0, kind: input, shape index: {}]
  %s1 = inlined_call_operand.hbm [shape: f32[3,256], index: 1, kind: input, shape index: {}]
  %s2 = inlined_call_operand.vmem [shape: f32[1,256], index: 2, kind: input, shape index: {}]
  %s3 = inlined_call_operand.vmem [shape: bf16[64,256], index: 3, kind: input, shape index: {}]
  %s4 = inlined_call_operand.hbm [shape: bf16[64,256], index: 4, kind: input, shape index: {}]
  %s5 = inlined_call_operand.hbm [shape: bf16[64,256], index: 5, kind: input, shape index: {}]
  %s6 = inlined_call_operand.hbm [shape: f32[1,256], index: 6, kind: input, shape index: {}]
  %s7 = inlined_call_operand.vmem [shape: bf16[64,3], index: 7, kind: input, shape index: {}]
  %s8 = inlined_call_operand.hbm [shape: f32[1,3], index: 8, kind: input, shape index: {}]
  %s9 = inlined_call_operand.hbm [shape: f32[2,3], index: 9, kind: output, shape index: {}]
  %s10 = sld [smem:[#allocation0]]
  $region66: #{lstm_predictor.1} parent=0
    _
  %s12 = ssub.s32 1, %s10
  %s13 = scalar_select 0, %s12, %s10
  $region1: #{lstm_predictor.1} parent=0
    #allocation3 [shape = 'u8[4096]{0}', space=vmem, size = 0x1000, scoped, tag = 'input window, operand 1, single buffered']
    #allocation4 [shape = 's32[1]{0}', space=sflag, size = 0x4, scoped, tag = 'scoped memory for lstm_predictor.1']
    #allocation5 [shape = 's32[1]{0}', space=sflag, size = 0x4, scoped, tag = 'scoped memory for lstm_predictor.1']
    #allocation6 [shape = 'u8[32768]{0}', space=vmem, size = 0x8000, scoped, tag = 'input window, operand 4, single buffered']
    #allocation7 [shape = 's32[1]{0}', space=sflag, size = 0x4, scoped, tag = 'scoped memory for lstm_predictor.1']
    #allocation8 [shape = 'u8[32768]{0}', space=vmem, size = 0x8000, scoped, tag = 'input window, operand 5, single buffered']
    #allocation9 [shape = 'u8[1024]{0}', space=vmem, size = 0x400, scoped, tag = 'input window, operand 6, single buffered']
    #allocation10 [shape = 's32[1]{0}', space=sflag, size = 0x4, scoped, tag = 'scoped memory for lstm_predictor.1']
    #allocation11 [shape = 'u8[512]{0}', space=vmem, size = 0x400, scoped, tag = 'input window, operand 8, single buffered']
    #allocation12 [shape = 'u8[1024]{0}', space=vmem, size = 0x400, scoped, tag = 'output window, operand 0, single buffered']
    %14 = vsyncpa [#allocation4], 0
    %15 = vsyncpa [#allocation7], 0
    %16 = vsyncpa [#allocation10], 0
    %17 = vsyncpa [#allocation5], 0
    // Predicated region
    $region2: #{lstm_predictor.1} parent=1 // pred_check
      _
    $region3: #{lstm_predictor.1} parent=1 // pred_check_branch
      %19 = sbr.rel (0) target = $region5
    $region4: #{lstm_predictor.1} parent=1 // pred_region
      _
    $region5: #{lstm_predictor.1} parent=1 // pred_fallthru
      _
    // Predicated region
    $region6: #{lstm_predictor.1} parent=1 // pred_check
      _
    $region7: #{lstm_predictor.1} parent=1 // pred_check_branch
      %21 = sbr.rel (0) target = $region9
    $region8: #{lstm_predictor.1} parent=1 // pred_region
      %s23 = ssub.s32 128, 128
      %24 = vsyncadd [#allocation4], %s23
      %s26 = sshll.u32 [#allocation3], 4
      %s27 = int_to_ptr.vmem [resolvable:$true] %s26
      %29 = dma.hbm_to_vmem [thread:$0]  %s1, 128, %s27, [#allocation4]
    $region9: #{lstm_predictor.1} parent=1 // pred_fallthru
      _
    // Predicated region
    $region10: #{lstm_predictor.1} parent=1 // pred_check
      _
    $region11: #{lstm_predictor.1} parent=1 // pred_check_branch
      %31 = sbr.rel (0) target = $region13
    $region12: #{lstm_predictor.1} parent=1 // pred_region
      _
    $region13: #{lstm_predictor.1} parent=1 // pred_fallthru
      _
    // Predicated region
    $region14: #{lstm_predictor.1} parent=1 // pred_check
      _
    $region15: #{lstm_predictor.1} parent=1 // pred_check_branch
      %33 = sbr.rel (0) target = $region17
    $region16: #{lstm_predictor.1} parent=1 // pred_region
      _
    $region17: #{lstm_predictor.1} parent=1 // pred_fallthru
      _
    // Predicated region
    $region18: #{lstm_predictor.1} parent=1 // pred_check
      _
    $region19: #{lstm_predictor.1} parent=1 // pred_check_branch
      %35 = sbr.rel (0) target = $region21
    $region20: #{lstm_predictor.1} parent=1 // pred_region
      %s37 = ssub.s32 1024, 1024
      %38 = vsyncadd [#allocation7], %s37
      %s39 = sshll.u32 [#allocation6], 4
      %s40 = int_to_ptr.vmem [resolvable:$true] %s39
      %45 = dma.hbm_to_vmem [thread:$0]  %s4, 1024, %s40, [#allocation7], 128, 128, 8
    $region21: #{lstm_predictor.1} parent=1 // pred_fallthru
      _
    // Predicated region
    $region22: #{lstm_predictor.1} parent=1 // pred_check
      _
    $region23: #{lstm_predictor.1} parent=1 // pred_check_branch
      %47 = sbr.rel (0) target = $region25
    $region24: #{lstm_predictor.1} parent=1 // pred_region
      %s49 = ssub.s32 1024, 1024
      %50 = vsyncadd [#allocation7], %s49
      %s51 = sshll.u32 [#allocation8], 4
      %s52 = int_to_ptr.vmem [resolvable:$true] %s51
      %57 = dma.hbm_to_vmem [thread:$0]  %s5, 1024, %s52, [#allocation7], 128, 128, 8
    $region25: #{lstm_predictor.1} parent=1 // pred_fallthru
      _
    // Predicated region
    $region26: #{lstm_predictor.1} parent=1 // pred_check
      _
    $region27: #{lstm_predictor.1} parent=1 // pred_check_branch
      %59 = sbr.rel (0) target = $region29
    $region28: #{lstm_predictor.1} parent=1 // pred_region
      %s61 = ssub.s32 32, 32
      %62 = vsyncadd [#allocation10], %s61
      %s64 = sshll.u32 [#allocation9], 4
      %s65 = int_to_ptr.vmem [resolvable:$true] %s64
      %67 = dma.hbm_to_vmem [thread:$0]  %s6, 32, %s65, [#allocation10]
    $region29: #{lstm_predictor.1} parent=1 // pred_fallthru
      _
    // Predicated region
    $region30: #{lstm_predictor.1} parent=1 // pred_check
      _
    $region31: #{lstm_predictor.1} parent=1 // pred_check_branch
      %69 = sbr.rel (0) target = $region33
    $region32: #{lstm_predictor.1} parent=1 // pred_region
      _
    $region33: #{lstm_predictor.1} parent=1 // pred_fallthru
      _
    // Predicated region
    $region34: #{lstm_predictor.1} parent=1 // pred_check
      _
    $region35: #{lstm_predictor.1} parent=1 // pred_check_branch
      %71 = sbr.rel (0) target = $region37
    $region36: #{lstm_predictor.1} parent=1 // pred_region
      %s73 = ssub.s32 16, 16
      %74 = vsyncadd [#allocation10], %s73
      %s76 = sshll.u32 [#allocation11], 4
      %s77 = int_to_ptr.vmem [resolvable:$true] %s76
      %79 = dma.hbm_to_vmem [thread:$0]  %s8, 16, %s77, [#allocation10]
    $region37: #{lstm_predictor.1} parent=1 // pred_fallthru
      _
    // Predicated region
    $region38: #{lstm_predictor.1} parent=1 // pred_check
      _
    $region39: #{lstm_predictor.1} parent=1 // pred_check_branch
      %81 = sbr.rel (0) target = $region41
    $region40: #{lstm_predictor.1} parent=1 // pred_region
      %82 = dma.done [#allocation4], 128
    $region41: #{lstm_predictor.1} parent=1 // pred_fallthru
      _
    // Predicated region
    $region42: #{lstm_predictor.1} parent=1 // pred_check
      _
    $region43: #{lstm_predictor.1} parent=1 // pred_check_branch
      %84 = sbr.rel (0) target = $region45
    $region44: #{lstm_predictor.1} parent=1 // pred_region
      %85 = dma.done [#allocation7], 1024
    $region45: #{lstm_predictor.1} parent=1 // pred_fallthru
      _
    // Predicated region
    $region46: #{lstm_predictor.1} parent=1 // pred_check
      _
    $region47: #{lstm_predictor.1} parent=1 // pred_check_branch
      %87 = sbr.rel (0) target = $region49
    $region48: #{lstm_predictor.1} parent=1 // pred_region
      %88 = dma.done [#allocation7], 1024
    $region49: #{lstm_predictor.1} parent=1 // pred_fallthru
      _
    // Predicated region
    $region50: #{lstm_predictor.1} parent=1 // pred_check
      _
    $region51: #{lstm_predictor.1} parent=1 // pred_check_branch
      %90 = sbr.rel (0) target = $region53
    $region52: #{lstm_predictor.1} parent=1 // pred_region
      %91 = dma.done [#allocation10], 32
    $region53: #{lstm_predictor.1} parent=1 // pred_fallthru
      _
    // Predicated region
    $region54: #{lstm_predictor.1} parent=1 // pred_check
      _
    $region55: #{lstm_predictor.1} parent=1 // pred_check_branch
      %93 = sbr.rel (0) target = $region57
    $region56: #{lstm_predictor.1} parent=1 // pred_region
      %94 = dma.done [#allocation10], 16
    $region57: #{lstm_predictor.1} parent=1 // pred_fallthru
      _
    %v96 = vld [vmem:[%s0] sm:$0xff]
    %v97 = vld [vmem:[%s0 + $0x8] sm:$0xff]
    %v98 = vld [vmem:[#allocation3] sm:$0x77]
    %v99 = vld [vmem:[%s2] sm:$0x3]
    %v101 = vlaneseq
    %v102 = vshrl.u32 %v101, 7
    %v103 = vsub.s32 0, %v102
    %v104 = vrot.slane %v99, %v103
    %v105 = vlaneseq
    %v106 = vshrl.u32 %v105, 7
    %v107 = vsub.s32 1, %v106
    %v108 = vrot.slane %v99, %v107
    %v112 = vcombine.high %v98, %v98
    %vm113 = vcmask 23552
    %v115 = vsel %vm113, %v96, 0
    %v118 = vsel %vm113, %v97, 0
    %vm120 = vcmask 1042432
    %v121 = vsel %vm120, %v98, 0
    %v123 = vsel %vm120, %v112, 0
    %125 = vmatprep.subr.mxu0 0.0
    %126 = vmatpush1.msra.mxu0 0.0
    %127 = vmatprep.subr.mxu0 0.0
    %128 = vmatpush1.msra.mxu0 0.0
    %129 = vmatprep.subr.mxu0 0.0
    %130 = vmatpush1.msra.mxu0 0.0
    %131 = vmatprep.subr.mxu0 0.0
    %132 = vmatpush1.msra.mxu0 0.0
    %133 = vmatprep.subr.mxu0 0.0
    %134 = vmatpush1.msra.mxu0 0.0
    %135 = vmatprep.subr.mxu0 0.0
    %136 = vmatpush1.msra.mxu0 0.0
    %137 = vmatprep.subr.mxu0 0.0
    %138 = vmatpush1.msra.mxu0 0.0
    %139 = vmatprep.subr.mxu0 0.0
    %140 = vmatpush1.msra.mxu0 0.0
    %141 = vmatprep.subr.mxu0 0.0
    %142 = vmatpush1.msra.mxu0 0.0
    %143 = vmatprep.subr.mxu0 0.0
    %144 = vmatpush1.msra.mxu0 0.0
    %145 = vmatprep.subr.mxu0 0.0
    %146 = vmatpush1.msra.mxu0 0.0
    %147 = vmatprep.subr.mxu0 0.0
    %148 = vmatpush1.msra.mxu0 0.0
    %149 = vmatprep.subr.mxu0 0.0
    %150 = vmatpush1.msra.mxu0 0.0
    %151 = vmatprep.subr.mxu0 0.0
    %152 = vmatpush1.msra.mxu0 0.0
    %153 = vmatprep.subr.mxu0 0.0
    %154 = vmatpush1.msra.mxu0 0.0
    %155 = vmatprep.subr.mxu0 %v123
    %156 = vmatpush1.msra.mxu0 %v121
    %157 = vmatprep.subr.mxu0 0.0
    %158 = vmatpush2.msra.mxu0 0.0
    %159 = vmatprep.subr.mxu0 0.0
    %160 = vmatpush2.msra.mxu0 0.0
    %161 = vmatprep.subr.mxu0 0.0
    %162 = vmatpush2.msra.mxu0 0.0
    %163 = vmatprep.subr.mxu0 0.0
    %164 = vmatpush2.msra.mxu0 0.0
    %165 = vmatprep.subr.mxu0 0.0
    %166 = vmatpush2.msra.mxu0 0.0
    %167 = vmatprep.subr.mxu0 0.0
    %168 = vmatpush2.msra.mxu0 0.0
    %169 = vmatprep.subr.mxu0 0.0
    %170 = vmatpush2.msra.mxu0 0.0
    %171 = vmatprep.subr.mxu0 0.0
    %172 = vmatpush2.msra.mxu0 0.0
    %173 = vmatprep.subr.mxu0 0.0
    %174 = vmatpush2.msra.mxu0 0.0
    %175 = vmatprep.subr.mxu0 0.0
    %176 = vmatpush2.msra.mxu0 0.0
    %177 = vmatprep.subr.mxu0 0.0
    %178 = vmatpush2.msra.mxu0 0.0
    %179 = vmatprep.subr.mxu0 0.0
    %180 = vmatpush2.msra.mxu0 0.0
    %181 = vmatprep.subr.mxu0 0.0
    %182 = vmatpush2.msra.mxu0 0.0
    %183 = vmatprep.subr.mxu0 0.0
    %184 = vmatpush2.msra.mxu0 0.0
    %185 = vmatprep.subr.mxu0 0.0
    %186 = vmatpush2.msra.mxu0 0.0
    %187 = vmatprep.subr.mxu0 0.0
    %188 = vmatpush2.msra.mxu0 0.0
    %189 = vmatprep.mubr.f32.mxu0 0.0
    %190 = vmatmul.mubr.f32.gmra.mxu0 %v115
    %v191 = vpop.f32.mrf.mxu0
    %v192 = vadd.f32 %v104, %v191
    %v193 = vpop.f32.mrf.mxu0
    %v194 = vadd.f32 %v108, %v193
    %195 = vmatprep.mubr.f32.mxu0 0.0
    %196 = vmatmul.mubr.f32.gmra.mxu0 %v118
    %v197 = vpop.f32.mrf.mxu0
    %v198 = vadd.f32 %v104, %v197
    %v199 = vpop.f32.mrf.mxu0
    %v200 = vadd.f32 %v108, %v199
    %201 = vdwg.mxu0
    %202 = vst [vmem:[#allocation2] sm:$0xff] %v192
    %203 = vst [vmem:[#allocation2 + $0x8] sm:$0xff] %v194
    %204 = vst [vmem:[#allocation2 + $0x10] sm:$0xff] %v198
    %205 = vst [vmem:[#allocation2 + $0x18] sm:$0xff] %v200
    %v206 = vld [vmem:[#allocation9] sm:$0x3]
    %v208 = vlaneseq
    %v209 = vshrl.u32 %v208, 7
    %v210 = vsub.s32 0, %v209
    %v211 = vrot.slane %v206, %v210
    %v212 = vlaneseq
    %v213 = vshrl.u32 %v212, 7
    %v214 = vsub.s32 1, %v213
    %v215 = vrot.slane %v206, %v214
    %v218 = vld [vmem:[%s3] sm:$0xff]
    %v219 = vld [vmem:[%s3 + $0x8] sm:$0xff]
    %v220 = vld [vmem:[%s3 + $0x10] sm:$0xff]
    %v221 = vld [vmem:[%s3 + $0x18] sm:$0xff]
    %v222 = vld [vmem:[%s3 + $0x20] sm:$0xff]
    %v223 = vld [vmem:[%s3 + $0x28] sm:$0xff]
    %v224 = vld [vmem:[%s3 + $0x30] sm:$0xff]
    %v225 = vld [vmem:[%s3 + $0x38] sm:$0xff]
    %v234 = vunpack.c.l.b16 %v218
    %v235 = vunpack.c.h.b16 %v218
    %v236 = vunpack.c.l.b16 %v219
    %v237 = vunpack.c.h.b16 %v219
    %v238 = vunpack.c.l.b16 %v220
    %v239 = vunpack.c.h.b16 %v220
    %v240 = vunpack.c.l.b16 %v221
    %v241 = vunpack.c.h.b16 %v221
    %v242 = vunpack.c.l.b16 %v222
    %v243 = vunpack.c.h.b16 %v222
    %v244 = vunpack.c.l.b16 %v223
    %v245 = vunpack.c.h.b16 %v223
    %v246 = vunpack.c.l.b16 %v224
    %v247 = vunpack.c.h.b16 %v224
    %v248 = vunpack.c.l.b16 %v225
    %v249 = vunpack.c.h.b16 %v225
    %v250 = vpack.c.b16 %v236, %v234
    %v251 = vpack.c.b16 %v237, %v235
    %v252 = vpack.c.b16 %v240, %v238
    %v253 = vpack.c.b16 %v241, %v239
    %v254 = vpack.c.b16 %v244, %v242
    %v255 = vpack.c.b16 %v245, %v243
    %v256 = vpack.c.b16 %v248, %v246
    %v257 = vpack.c.b16 %v249, %v247
    %vm266 = vcmask 523264
    %v268 = vsel %vm266, 0, 0
    %270 = vmatprep.subr.bf16.mxu0 0
    %271 = vmatpush1.bf16.msra.mxu0 0
    %272 = vmatprep.subr.bf16.mxu0 0
    %273 = vmatpush1.bf16.msra.mxu0 0
    %274 = vmatprep.subr.bf16.mxu0 0
    %275 = vmatpush1.bf16.msra.mxu0 0
    %276 = vmatprep.subr.bf16.mxu0 0
    %277 = vmatpush1.bf16.msra.mxu0 0
    %278 = vmatprep.subr.bf16.mxu0 %v257
    %279 = vmatpush1.bf16.msra.mxu0 %v256
    %280 = vmatprep.subr.bf16.mxu0 %v255
    %281 = vmatpush1.bf16.msra.mxu0 %v254
    %282 = vmatprep.subr.bf16.mxu0 %v253
    %283 = vmatpush1.bf16.msra.mxu0 %v252
    %284 = vmatprep.subr.bf16.mxu0 %v251
    %285 = vmatpush1.bf16.msra.mxu0 %v250
    %286 = vmatprep.subr.bf16.mxu0 0
    %287 = vmatpush2.bf16.msra.mxu0 0
    %288 = vmatprep.subr.bf16.mxu0 0
    %289 = vmatpush2.bf16.msra.mxu0 0
    %290 = vmatprep.subr.bf16.mxu0 0
    %291 = vmatpush2.bf16.msra.mxu0 0
    %292 = vmatprep.subr.bf16.mxu0 0
    %293 = vmatpush2.bf16.msra.mxu0 0
    %294 = vmatprep.subr.bf16.mxu0 0
    %295 = vmatpush2.bf16.msra.mxu0 0
    %296 = vmatprep.subr.bf16.mxu0 0
    %297 = vmatpush2.bf16.msra.mxu0 0
    %298 = vmatprep.subr.bf16.mxu0 0
    %299 = vmatpush2.bf16.msra.mxu0 0
    %300 = vmatprep.subr.bf16.mxu0 0
    %301 = vmatpush2.bf16.msra.mxu0 0
    %302 = vmatprep.mubr.bf16.mxu0 0
    %303 = vmatmul.mubr.bf16.gmra.mxu0 %v268
    %v304 = vpop.f32.mrf.mxu0
    %v305 = vadd.f32 0.0, %v304
    %v306 = vpop.f32.mrf.mxu0
    %v307 = vadd.f32 0.0, %v306
    %v308 = vpop.f32.mrf.mxu0
    %v309 = vpop.f32.mrf.mxu0
    %310 = vdwg.mxu0
    %v311 = vld [vmem:[#allocation8] sm:$0xff]
    %v312 = vld [vmem:[#allocation8 + $0x8] sm:$0xff]
    %v313 = vld [vmem:[#allocation8 + $0x10] sm:$0xff]
    %v314 = vld [vmem:[#allocation8 + $0x18] sm:$0xff]
    %v315 = vld [vmem:[#allocation8 + $0x20] sm:$0xff]
    %v316 = vld [vmem:[#allocation8 + $0x28] sm:$0xff]
    %v317 = vld [vmem:[#allocation8 + $0x30] sm:$0xff]
    %v318 = vld [vmem:[#allocation8 + $0x38] sm:$0xff]
    %v327 = vunpack.c.l.b16 %v311
    %v328 = vunpack.c.h.b16 %v311
    %v329 = vunpack.c.l.b16 %v312
    %v330 = vunpack.c.h.b16 %v312
    %v331 = vunpack.c.l.b16 %v313
    %v332 = vunpack.c.h.b16 %v313
    %v333 = vunpack.c.l.b16 %v314
    %v334 = vunpack.c.h.b16 %v314
    %v335 = vunpack.c.l.b16 %v315
    %v336 = vunpack.c.h.b16 %v315
    %v337 = vunpack.c.l.b16 %v316
    %v338 = vunpack.c.h.b16 %v316
    %v339 = vunpack.c.l.b16 %v317
    %v340 = vunpack.c.h.b16 %v317
    %v341 = vunpack.c.l.b16 %v318
    %v342 = vunpack.c.h.b16 %v318
    %v343 = vpack.c.b16 %v329, %v327
    %v344 = vpack.c.b16 %v330, %v328
    %v345 = vpack.c.b16 %v333, %v331
    %v346 = vpack.c.b16 %v334, %v332
    %v347 = vpack.c.b16 %v337, %v335
    %v348 = vpack.c.b16 %v338, %v336
    %v349 = vpack.c.b16 %v341, %v339
    %v350 = vpack.c.b16 %v342, %v340
    %359 = vmatprep.subr.bf16.mxu0 0
    %360 = vmatpush1.bf16.msra.mxu0 0
    %361 = vmatprep.subr.bf16.mxu0 0
    %362 = vmatpush1.bf16.msra.mxu0 0
    %363 = vmatprep.subr.bf16.mxu0 0
    %364 = vmatpush1.bf16.msra.mxu0 0
    %365 = vmatprep.subr.bf16.mxu0 0
    %366 = vmatpush1.bf16.msra.mxu0 0
    %367 = vmatprep.subr.bf16.mxu0 %v350
    %368 = vmatpush1.bf16.msra.mxu0 %v349
    %369 = vmatprep.subr.bf16.mxu0 %v348
    %370 = vmatpush1.bf16.msra.mxu0 %v347
    %371 = vmatprep.subr.bf16.mxu0 %v346
    %372 = vmatpush1.bf16.msra.mxu0 %v345
    %373 = vmatprep.subr.bf16.mxu0 %v344
    %374 = vmatpush1.bf16.msra.mxu0 %v343
    %375 = vmatprep.subr.bf16.mxu0 0
    %376 = vmatpush2.bf16.msra.mxu0 0
    %377 = vmatprep.subr.bf16.mxu0 0
    %378 = vmatpush2.bf16.msra.mxu0 0
    %379 = vmatprep.subr.bf16.mxu0 0
    %380 = vmatpush2.bf16.msra.mxu0 0
    %381 = vmatprep.subr.bf16.mxu0 0
    %382 = vmatpush2.bf16.msra.mxu0 0
    %383 = vmatprep.subr.bf16.mxu0 0
    %384 = vmatpush2.bf16.msra.mxu0 0
    %385 = vmatprep.subr.bf16.mxu0 0
    %386 = vmatpush2.bf16.msra.mxu0 0
    %387 = vmatprep.subr.bf16.mxu0 0
    %388 = vmatpush2.bf16.msra.mxu0 0
    %389 = vmatprep.subr.bf16.mxu0 0
    %390 = vmatpush2.bf16.msra.mxu0 0
    %391 = vmatprep.mubr.bf16.mxu0 0
    %392 = vmatmul.mubr.bf16.gmra.mxu0 %v268
    %v393 = vpop.f32.mrf.mxu0
    %v394 = vadd.f32 0.0, %v393
    %v395 = vpop.f32.mrf.mxu0
    %v396 = vadd.f32 0.0, %v395
    %v397 = vpop.f32.mrf.mxu0
    %v398 = vpop.f32.mrf.mxu0
    %399 = vdwg.mxu0
    %v400 = vld [vmem:[#allocation2] sm:$0x3]
    %v401 = vld [vmem:[#allocation2 + $0x8] sm:$0x3]
    %v402 = vadd.f32 %v400, %v305
    %v403 = vadd.f32 %v401, %v307
    %v404 = vxor.u32 %v402, 2147483648
    %v405 = vmul.f32 %v404, 1.442695
    %v406 = vpow.pop %v405
    %v407 = vadd.f32 %v406, 1.0
    %v408 = vrcp.pop %v407
    %v409 = vmul.f32 1.0, %v408
    %v410 = vxor.u32 %v403, 2147483648
    %v411 = vmul.f32 %v410, 1.442695
    %v412 = vpow.pop %v411
    %v413 = vadd.f32 %v412, 1.0
    %v414 = vrcp.pop %v413
    %v415 = vmul.f32 1.0, %v414
    %v416 = vtanh.pop %v403
    %v417 = vmul.f32 %v409, 0.0
    %v418 = vmul.f32 %v409, %v416
    %420 = vrot.lane.b32.xlu0 %v418, 64
    %v421 = vpop.permute.xlu0 %420
    %v423 = vadd.f32 %v417, %v421
    %v424 = vtanh.pop %v423
    %v425 = vmul.f32 %v415, %v424
    %v426 = vpack.c.bf16 %v425, %v425
    %v427 = vld [vmem:[#allocation6] sm:$0xff]
    %v428 = vld [vmem:[#allocation6 + $0x8] sm:$0xff]
    %v429 = vld [vmem:[#allocation6 + $0x10] sm:$0xff]
    %v430 = vld [vmem:[#allocation6 + $0x18] sm:$0xff]
    %v431 = vld [vmem:[#allocation6 + $0x20] sm:$0xff]
    %v432 = vld [vmem:[#allocation6 + $0x28] sm:$0xff]
    %v433 = vld [vmem:[#allocation6 + $0x30] sm:$0xff]
    %v434 = vld [vmem:[#allocation6 + $0x38] sm:$0xff]
    %436 = vrot.lane.b32.xlu0 %v426, 64
    %v437 = vpop.permute.xlu0 %436
    %v446 = vunpack.c.l.b16 %v427
    %v447 = vunpack.c.h.b16 %v427
    %v448 = vunpack.c.l.b16 %v428
    %v449 = vunpack.c.h.b16 %v428
    %v450 = vunpack.c.l.b16 %v429
    %v451 = vunpack.c.h.b16 %v429
    %v452 = vunpack.c.l.b16 %v430
    %v453 = vunpack.c.h.b16 %v430
    %v454 = vunpack.c.l.b16 %v431
    %v455 = vunpack.c.h.b16 %v431
    %v456 = vunpack.c.l.b16 %v432
    %v457 = vunpack.c.h.b16 %v432
    %v458 = vunpack.c.l.b16 %v433
    %v459 = vunpack.c.h.b16 %v433
    %v460 = vunpack.c.l.b16 %v434
    %v461 = vunpack.c.h.b16 %v434
    %v462 = vpack.c.b16 %v448, %v446
    %v463 = vpack.c.b16 %v449, %v447
    %v464 = vpack.c.b16 %v452, %v450
    %v465 = vpack.c.b16 %v453, %v451
    %v466 = vpack.c.b16 %v456, %v454
    %v467 = vpack.c.b16 %v457, %v455
    %v468 = vpack.c.b16 %v460, %v458
    %v469 = vpack.c.b16 %v461, %v459
    %v479 = vsel %vm266, %v437, 0
    %481 = vmatprep.subr.bf16.mxu0 0
    %482 = vmatpush1.bf16.msra.mxu0 0
    %483 = vmatprep.subr.bf16.mxu0 0
    %484 = vmatpush1.bf16.msra.mxu0 0
    %485 = vmatprep.subr.bf16.mxu0 0
    %486 = vmatpush1.bf16.msra.mxu0 0
    %487 = vmatprep.subr.bf16.mxu0 0
    %488 = vmatpush1.bf16.msra.mxu0 0
    %489 = vmatprep.subr.bf16.mxu0 %v469
    %490 = vmatpush1.bf16.msra.mxu0 %v468
    %491 = vmatprep.subr.bf16.mxu0 %v467
    %492 = vmatpush1.bf16.msra.mxu0 %v466
    %493 = vmatprep.subr.bf16.mxu0 %v465
    %494 = vmatpush1.bf16.msra.mxu0 %v464
    %495 = vmatprep.subr.bf16.mxu0 %v463
    %496 = vmatpush1.bf16.msra.mxu0 %v462
    %497 = vmatprep.subr.bf16.mxu0 0
    %498 = vmatpush2.bf16.msra.mxu0 0
    %499 = vmatprep.subr.bf16.mxu0 0
    %500 = vmatpush2.bf16.msra.mxu0 0
    %501 = vmatprep.subr.bf16.mxu0 0
    %502 = vmatpush2.bf16.msra.mxu0 0
    %503 = vmatprep.subr.bf16.mxu0 0
    %504 = vmatpush2.bf16.msra.mxu0 0
    %505 = vmatprep.subr.bf16.mxu0 0
    %506 = vmatpush2.bf16.msra.mxu0 0
    %507 = vmatprep.subr.bf16.mxu0 0
    %508 = vmatpush2.bf16.msra.mxu0 0
    %509 = vmatprep.subr.bf16.mxu0 0
    %510 = vmatpush2.bf16.msra.mxu0 0
    %511 = vmatprep.subr.bf16.mxu0 0
    %512 = vmatpush2.bf16.msra.mxu0 0
    %513 = vmatprep.mubr.bf16.mxu0 0
    %514 = vmatmul.mubr.bf16.gmra.mxu0 %v479
    %v515 = vpop.f32.mrf.mxu0
    %v516 = vadd.f32 %v394, %v515
    %v517 = vpop.f32.mrf.mxu0
    %v518 = vadd.f32 %v396, %v517
    %v519 = vpop.f32.mrf.mxu0
    %v520 = vpop.f32.mrf.mxu0
    %521 = vdwg.mxu0
    %v522 = vadd.f32 %v516, %v211
    %v523 = vadd.f32 %v518, %v215
    %v524 = vxor.u32 %v522, 2147483648
    %v525 = vmul.f32 %v524, 1.442695
    %v526 = vpow.pop %v525
    %v527 = vadd.f32 %v526, 1.0
    %v528 = vrcp.pop %v527
    %v529 = vmul.f32 1.0, %v528
    %v530 = vxor.u32 %v523, 2147483648
    %v531 = vmul.f32 %v530, 1.442695
    %v532 = vpow.pop %v531
    %v533 = vadd.f32 %v532, 1.0
    %v534 = vrcp.pop %v533
    %v535 = vmul.f32 1.0, %v534
    %v536 = vtanh.pop %v523
    %v537 = vmul.f32 %v529, 0.0
    %v538 = vmul.f32 %v529, %v536
    %540 = vrot.lane.b32.xlu0 %v538, 64
    %v541 = vpop.permute.xlu0 %540
    %v543 = vadd.f32 %v537, %v541
    %v544 = vtanh.pop %v543
    %v545 = vmul.f32 %v535, %v544
    %546 = vmatprep.subr.bf16.mxu0 0
    %547 = vmatpush1.bf16.msra.mxu0 0
    %548 = vmatprep.subr.bf16.mxu0 0
    %549 = vmatpush1.bf16.msra.mxu0 0
    %550 = vmatprep.subr.bf16.mxu0 0
    %551 = vmatpush1.bf16.msra.mxu0 0
    %552 = vmatprep.subr.bf16.mxu0 0
    %553 = vmatpush1.bf16.msra.mxu0 0
    %554 = vmatprep.subr.bf16.mxu0 %v257
    %555 = vmatpush1.bf16.msra.mxu0 %v256
    %556 = vmatprep.subr.bf16.mxu0 %v255
    %557 = vmatpush1.bf16.msra.mxu0 %v254
    %558 = vmatprep.subr.bf16.mxu0 %v253
    %559 = vmatpush1.bf16.msra.mxu0 %v252
    %560 = vmatprep.subr.bf16.mxu0 %v251
    %561 = vmatpush1.bf16.msra.mxu0 %v250
    %562 = vmatprep.subr.bf16.mxu0 0
    %563 = vmatpush2.bf16.msra.mxu0 0
    %564 = vmatprep.subr.bf16.mxu0 0
    %565 = vmatpush2.bf16.msra.mxu0 0
    %566 = vmatprep.subr.bf16.mxu0 0
    %567 = vmatpush2.bf16.msra.mxu0 0
    %568 = vmatprep.subr.bf16.mxu0 0
    %569 = vmatpush2.bf16.msra.mxu0 0
    %570 = vmatprep.subr.bf16.mxu0 0
    %571 = vmatpush2.bf16.msra.mxu0 0
    %572 = vmatprep.subr.bf16.mxu0 0
    %573 = vmatpush2.bf16.msra.mxu0 0
    %574 = vmatprep.subr.bf16.mxu0 0
    %575 = vmatpush2.bf16.msra.mxu0 0
    %576 = vmatprep.subr.bf16.mxu0 0
    %577 = vmatpush2.bf16.msra.mxu0 0
    %578 = vmatprep.mubr.bf16.mxu0 0
    %579 = vmatmul.mubr.bf16.gmra.mxu0 %v479
    %v580 = vpop.f32.mrf.mxu0
    %v581 = vadd.f32 0.0, %v580
    %v582 = vpop.f32.mrf.mxu0
    %v583 = vadd.f32 0.0, %v582
    %v584 = vpop.f32.mrf.mxu0
    %v585 = vpop.f32.mrf.mxu0
    %586 = vdwg.mxu0
    %v587 = vpack.c.bf16 %v545, %v545
    %589 = vrot.lane.b32.xlu0 %v587, 64
    %v590 = vpop.permute.xlu0 %589
    %v592 = vsel %vm266, %v590, 0
    %594 = vmatprep.subr.bf16.mxu0 0
    %595 = vmatpush1.bf16.msra.mxu0 0
    %596 = vmatprep.subr.bf16.mxu0 0
    %597 = vmatpush1.bf16.msra.mxu0 0
    %598 = vmatprep.subr.bf16.mxu0 0
    %599 = vmatpush1.bf16.msra.mxu0 0
    %600 = vmatprep.subr.bf16.mxu0 0
    %601 = vmatpush1.bf16.msra.mxu0 0
    %602 = vmatprep.subr.bf16.mxu0 %v350
    %603 = vmatpush1.bf16.msra.mxu0 %v349
    %604 = vmatprep.subr.bf16.mxu0 %v348
    %605 = vmatpush1.bf16.msra.mxu0 %v347
    %606 = vmatprep.subr.bf16.mxu0 %v346
    %607 = vmatpush1.bf16.msra.mxu0 %v345
    %608 = vmatprep.subr.bf16.mxu0 %v344
    %609 = vmatpush1.bf16.msra.mxu0 %v343
    %610 = vmatprep.subr.bf16.mxu0 0
    %611 = vmatpush2.bf16.msra.mxu0 0
    %612 = vmatprep.subr.bf16.mxu0 0
    %613 = vmatpush2.bf16.msra.mxu0 0
    %614 = vmatprep.subr.bf16.mxu0 0
    %615 = vmatpush2.bf16.msra.mxu0 0
    %616 = vmatprep.subr.bf16.mxu0 0
    %617 = vmatpush2.bf16.msra.mxu0 0
    %618 = vmatprep.subr.bf16.mxu0 0
    %619 = vmatpush2.bf16.msra.mxu0 0
    %620 = vmatprep.subr.bf16.mxu0 0
    %621 = vmatpush2.bf16.msra.mxu0 0
    %622 = vmatprep.subr.bf16.mxu0 0
    %623 = vmatpush2.bf16.msra.mxu0 0
    %624 = vmatprep.subr.bf16.mxu0 0
    %625 = vmatpush2.bf16.msra.mxu0 0
    %626 = vmatprep.mubr.bf16.mxu0 0
    %627 = vmatmul.mubr.bf16.gmra.mxu0 %v592
    %v628 = vpop.f32.mrf.mxu0
    %v629 = vadd.f32 0.0, %v628
    %v630 = vpop.f32.mrf.mxu0
    %v631 = vadd.f32 0.0, %v630
    %v632 = vpop.f32.mrf.mxu0
    %v633 = vpop.f32.mrf.mxu0
    %634 = vdwg.mxu0
    %v635 = vld [vmem:[#allocation2] sm:$0xc]
    %v636 = vld [vmem:[#allocation2 + $0x8] sm:$0xc]
    %v639 = vrot.slane %v581, 6
    %v640 = vrot.slane %v583, 6
    %v643 = vadd.f32 %v635, %v639
    %v644 = vadd.f32 %v636, %v640
    %v645 = vxor.u32 %v643, 2147483648
    %v646 = vmul.f32 %v645, 1.442695
    %v647 = vpow.pop %v646
    %v648 = vadd.f32 %v647, 1.0
    %v649 = vrcp.pop %v648
    %v650 = vmul.f32 1.0, %v649
    %v651 = vxor.u32 %v644, 2147483648
    %v652 = vmul.f32 %v651, 1.442695
    %v653 = vpow.pop %v652
    %v654 = vadd.f32 %v653, 1.0
    %v655 = vrcp.pop %v654
    %v656 = vmul.f32 1.0, %v655
    %v657 = vtanh.pop %v644
    %v659 = vrot.slane %v423, 6
    %v661 = vmul.f32 %v650, %v659
    %v662 = vmul.f32 %v650, %v657
    %664 = vrot.lane.b32.xlu0 %v662, 64
    %v665 = vpop.permute.xlu0 %664
    %v667 = vadd.f32 %v661, %v665
    %v668 = vtanh.pop %v667
    %v669 = vmul.f32 %v656, %v668
    %v670 = vpack.c.bf16 %v669, %v669
    %v672 = vrot.slane %v670, 1
    %673 = vrot.lane.b32.xlu0 %v672, 64
    %v674 = vpop.permute.xlu0 %673
    %v676 = vsel %vm266, %v674, 0
    %678 = vmatprep.subr.bf16.mxu0 0
    %679 = vmatpush1.bf16.msra.mxu0 0
    %680 = vmatprep.subr.bf16.mxu0 0
    %681 = vmatpush1.bf16.msra.mxu0 0
    %682 = vmatprep.subr.bf16.mxu0 0
    %683 = vmatpush1.bf16.msra.mxu0 0
    %684 = vmatprep.subr.bf16.mxu0 0
    %685 = vmatpush1.bf16.msra.mxu0 0
    %686 = vmatprep.subr.bf16.mxu0 %v469
    %687 = vmatpush1.bf16.msra.mxu0 %v468
    %688 = vmatprep.subr.bf16.mxu0 %v467
    %689 = vmatpush1.bf16.msra.mxu0 %v466
    %690 = vmatprep.subr.bf16.mxu0 %v465
    %691 = vmatpush1.bf16.msra.mxu0 %v464
    %692 = vmatprep.subr.bf16.mxu0 %v463
    %693 = vmatpush1.bf16.msra.mxu0 %v462
    %694 = vmatprep.subr.bf16.mxu0 0
    %695 = vmatpush2.bf16.msra.mxu0 0
    %696 = vmatprep.subr.bf16.mxu0 0
    %697 = vmatpush2.bf16.msra.mxu0 0
    %698 = vmatprep.subr.bf16.mxu0 0
    %699 = vmatpush2.bf16.msra.mxu0 0
    %700 = vmatprep.subr.bf16.mxu0 0
    %701 = vmatpush2.bf16.msra.mxu0 0
    %702 = vmatprep.subr.bf16.mxu0 0
    %703 = vmatpush2.bf16.msra.mxu0 0
    %704 = vmatprep.subr.bf16.mxu0 0
    %705 = vmatpush2.bf16.msra.mxu0 0
    %706 = vmatprep.subr.bf16.mxu0 0
    %707 = vmatpush2.bf16.msra.mxu0 0
    %708 = vmatprep.subr.bf16.mxu0 0
    %709 = vmatpush2.bf16.msra.mxu0 0
    %710 = vmatprep.mubr.bf16.mxu0 0
    %711 = vmatmul.mubr.bf16.gmra.mxu0 %v676
    %v712 = vpop.f32.mrf.mxu0
    %v713 = vadd.f32 %v629, %v712
    %v714 = vpop.f32.mrf.mxu0
    %v715 = vadd.f32 %v631, %v714
    %v716 = vpop.f32.mrf.mxu0
    %v717 = vpop.f32.mrf.mxu0
    %718 = vdwg.mxu0
    %v719 = vadd.f32 %v713, %v211
    %v720 = vadd.f32 %v715, %v215
    %v721 = vxor.u32 %v719, 2147483648
    %v722 = vmul.f32 %v721, 1.442695
    %v723 = vpow.pop %v722
    %v724 = vadd.f32 %v723, 1.0
    %v725 = vrcp.pop %v724
    %v726 = vmul.f32 1.0, %v725
    %v727 = vxor.u32 %v720, 2147483648
    %v728 = vmul.f32 %v727, 1.442695
    %v729 = vpow.pop %v728
    %v730 = vadd.f32 %v729, 1.0
    %v731 = vrcp.pop %v730
    %v732 = vmul.f32 1.0, %v731
    %v733 = vtanh.pop %v720
    %v734 = vmul.f32 %v726, %v543
    %v735 = vmul.f32 %v726, %v733
    %737 = vrot.lane.b32.xlu0 %v735, 64
    %v738 = vpop.permute.xlu0 %737
    %v740 = vadd.f32 %v734, %v738
    %v741 = vtanh.pop %v740
    %v742 = vmul.f32 %v732, %v741
    %743 = vmatprep.subr.bf16.mxu0 0
    %744 = vmatpush1.bf16.msra.mxu0 0
    %745 = vmatprep.subr.bf16.mxu0 0
    %746 = vmatpush1.bf16.msra.mxu0 0
    %747 = vmatprep.subr.bf16.mxu0 0
    %748 = vmatpush1.bf16.msra.mxu0 0
    %749 = vmatprep.subr.bf16.mxu0 0
    %750 = vmatpush1.bf16.msra.mxu0 0
    %751 = vmatprep.subr.bf16.mxu0 %v257
    %752 = vmatpush1.bf16.msra.mxu0 %v256
    %753 = vmatprep.subr.bf16.mxu0 %v255
    %754 = vmatpush1.bf16.msra.mxu0 %v254
    %755 = vmatprep.subr.bf16.mxu0 %v253
    %756 = vmatpush1.bf16.msra.mxu0 %v252
    %757 = vmatprep.subr.bf16.mxu0 %v251
    %758 = vmatpush1.bf16.msra.mxu0 %v250
    %759 = vmatprep.subr.bf16.mxu0 0
    %760 = vmatpush2.bf16.msra.mxu0 0
    %761 = vmatprep.subr.bf16.mxu0 0
    %762 = vmatpush2.bf16.msra.mxu0 0
    %763 = vmatprep.subr.bf16.mxu0 0
    %764 = vmatpush2.bf16.msra.mxu0 0
    %765 = vmatprep.subr.bf16.mxu0 0
    %766 = vmatpush2.bf16.msra.mxu0 0
    %767 = vmatprep.subr.bf16.mxu0 0
    %768 = vmatpush2.bf16.msra.mxu0 0
    %769 = vmatprep.subr.bf16.mxu0 0
    %770 = vmatpush2.bf16.msra.mxu0 0
    %771 = vmatprep.subr.bf16.mxu0 0
    %772 = vmatpush2.bf16.msra.mxu0 0
    %773 = vmatprep.subr.bf16.mxu0 0
    %774 = vmatpush2.bf16.msra.mxu0 0
    %775 = vmatprep.mubr.bf16.mxu0 0
    %776 = vmatmul.mubr.bf16.gmra.mxu0 %v676
    %v777 = vpop.f32.mrf.mxu0
    %v778 = vadd.f32 0.0, %v777
    %v779 = vpop.f32.mrf.mxu0
    %v780 = vadd.f32 0.0, %v779
    %v781 = vpop.f32.mrf.mxu0
    %v782 = vpop.f32.mrf.mxu0
    %783 = vdwg.mxu0
    %v784 = vpack.c.bf16 %v742, %v742
    %786 = vrot.lane.b32.xlu0 %v784, 64
    %v787 = vpop.permute.xlu0 %786
    %v789 = vsel %vm266, %v787, 0
    %791 = vmatprep.subr.bf16.mxu0 0
    %792 = vmatpush1.bf16.msra.mxu0 0
    %793 = vmatprep.subr.bf16.mxu0 0
    %794 = vmatpush1.bf16.msra.mxu0 0
    %795 = vmatprep.subr.bf16.mxu0 0
    %796 = vmatpush1.bf16.msra.mxu0 0
    %797 = vmatprep.subr.bf16.mxu0 0
    %798 = vmatpush1.bf16.msra.mxu0 0
    %799 = vmatprep.subr.bf16.mxu0 %v350
    %800 = vmatpush1.bf16.msra.mxu0 %v349
    %801 = vmatprep.subr.bf16.mxu0 %v348
    %802 = vmatpush1.bf16.msra.mxu0 %v347
    %803 = vmatprep.subr.bf16.mxu0 %v346
    %804 = vmatpush1.bf16.msra.mxu0 %v345
    %805 = vmatprep.subr.bf16.mxu0 %v344
    %806 = vmatpush1.bf16.msra.mxu0 %v343
    %807 = vmatprep.subr.bf16.mxu0 0
    %808 = vmatpush2.bf16.msra.mxu0 0
    %809 = vmatprep.subr.bf16.mxu0 0
    %810 = vmatpush2.bf16.msra.mxu0 0
    %811 = vmatprep.subr.bf16.mxu0 0
    %812 = vmatpush2.bf16.msra.mxu0 0
    %813 = vmatprep.subr.bf16.mxu0 0
    %814 = vmatpush2.bf16.msra.mxu0 0
    %815 = vmatprep.subr.bf16.mxu0 0
    %816 = vmatpush2.bf16.msra.mxu0 0
    %817 = vmatprep.subr.bf16.mxu0 0
    %818 = vmatpush2.bf16.msra.mxu0 0
    %819 = vmatprep.subr.bf16.mxu0 0
    %820 = vmatpush2.bf16.msra.mxu0 0
    %821 = vmatprep.subr.bf16.mxu0 0
    %822 = vmatpush2.bf16.msra.mxu0 0
    %823 = vmatprep.mubr.bf16.mxu0 0
    %824 = vmatmul.mubr.bf16.gmra.mxu0 %v789
    %v825 = vpop.f32.mrf.mxu0
    %v826 = vadd.f32 0.0, %v825
    %v827 = vpop.f32.mrf.mxu0
    %v828 = vadd.f32 0.0, %v827
    %v829 = vpop.f32.mrf.mxu0
    %v830 = vpop.f32.mrf.mxu0
    %831 = vdwg.mxu0
    %v832 = vld [vmem:[#allocation2] sm:$0x30]
    %v833 = vld [vmem:[#allocation2 + $0x8] sm:$0x30]
    %v836 = vrot.slane %v778, 4
    %v837 = vrot.slane %v780, 4
    %v840 = vadd.f32 %v832, %v836
    %v841 = vadd.f32 %v833, %v837
    %v842 = vxor.u32 %v840, 2147483648
    %v843 = vmul.f32 %v842, 1.442695
    %v844 = vpow.pop %v843
    %v845 = vadd.f32 %v844, 1.0
    %v846 = vrcp.pop %v845
    %v847 = vmul.f32 1.0, %v846
    %v848 = vxor.u32 %v841, 2147483648
    %v849 = vmul.f32 %v848, 1.442695
    %v850 = vpow.pop %v849
    %v851 = vadd.f32 %v850, 1.0
    %v852 = vrcp.pop %v851
    %v853 = vmul.f32 1.0, %v852
    %v854 = vtanh.pop %v841
    %v856 = vrot.slane %v667, 6
    %v858 = vmul.f32 %v847, %v856
    %v859 = vmul.f32 %v847, %v854
    %861 = vrot.lane.b32.xlu0 %v859, 64
    %v862 = vpop.permute.xlu0 %861
    %v864 = vadd.f32 %v858, %v862
    %v865 = vtanh.pop %v864
    %v866 = vmul.f32 %v853, %v865
    %v867 = vpack.c.bf16 %v866, %v866
    %v869 = vrot.slane %v867, 2
    %870 = vrot.lane.b32.xlu0 %v869, 64
    %v871 = vpop.permute.xlu0 %870
    %v873 = vsel %vm266, %v871, 0
    %875 = vmatprep.subr.bf16.mxu0 0
    %876 = vmatpush1.bf16.msra.mxu0 0
    %877 = vmatprep.subr.bf16.mxu0 0
    %878 = vmatpush1.bf16.msra.mxu0 0
    %879 = vmatprep.subr.bf16.mxu0 0
    %880 = vmatpush1.bf16.msra.mxu0 0
    %881 = vmatprep.subr.bf16.mxu0 0
    %882 = vmatpush1.bf16.msra.mxu0 0
    %883 = vmatprep.subr.bf16.mxu0 %v469
    %884 = vmatpush1.bf16.msra.mxu0 %v468
    %885 = vmatprep.subr.bf16.mxu0 %v467
    %886 = vmatpush1.bf16.msra.mxu0 %v466
    %887 = vmatprep.subr.bf16.mxu0 %v465
    %888 = vmatpush1.bf16.msra.mxu0 %v464
    %889 = vmatprep.subr.bf16.mxu0 %v463
    %890 = vmatpush1.bf16.msra.mxu0 %v462
    %891 = vmatprep.subr.bf16.mxu0 0
    %892 = vmatpush2.bf16.msra.mxu0 0
    %893 = vmatprep.subr.bf16.mxu0 0
    %894 = vmatpush2.bf16.msra.mxu0 0
    %895 = vmatprep.subr.bf16.mxu0 0
    %896 = vmatpush2.bf16.msra.mxu0 0
    %897 = vmatprep.subr.bf16.mxu0 0
    %898 = vmatpush2.bf16.msra.mxu0 0
    %899 = vmatprep.subr.bf16.mxu0 0
    %900 = vmatpush2.bf16.msra.mxu0 0
    %901 = vmatprep.subr.bf16.mxu0 0
    %902 = vmatpush2.bf16.msra.mxu0 0
    %903 = vmatprep.subr.bf16.mxu0 0
    %904 = vmatpush2.bf16.msra.mxu0 0
    %905 = vmatprep.subr.bf16.mxu0 0
    %906 = vmatpush2.bf16.msra.mxu0 0
    %907 = vmatprep.mubr.bf16.mxu0 0
    %908 = vmatmul.mubr.bf16.gmra.mxu0 %v873
    %v909 = vpop.f32.mrf.mxu0
    %v910 = vadd.f32 %v826, %v909
    %v911 = vpop.f32.mrf.mxu0
    %v912 = vadd.f32 %v828, %v911
    %v913 = vpop.f32.mrf.mxu0
    %v914 = vpop.f32.mrf.mxu0
    %915 = vdwg.mxu0
    %v916 = vadd.f32 %v910, %v211
    %v917 = vadd.f32 %v912, %v215
    %v918 = vxor.u32 %v916, 2147483648
    %v919 = vmul.f32 %v918, 1.442695
    %v920 = vpow.pop %v919
    %v921 = vadd.f32 %v920, 1.0
    %v922 = vrcp.pop %v921
    %v923 = vmul.f32 1.0, %v922
    %v924 = vxor.u32 %v917, 2147483648
    %v925 = vmul.f32 %v924, 1.442695
    %v926 = vpow.pop %v925
    %v927 = vadd.f32 %v926, 1.0
    %v928 = vrcp.pop %v927
    %v929 = vmul.f32 1.0, %v928
    %v930 = vtanh.pop %v917
    %v931 = vmul.f32 %v923, %v740
    %v932 = vmul.f32 %v923, %v930
    %934 = vrot.lane.b32.xlu0 %v932, 64
    %v935 = vpop.permute.xlu0 %934
    %v937 = vadd.f32 %v931, %v935
    %v938 = vtanh.pop %v937
    %v939 = vmul.f32 %v929, %v938
    %940 = vmatprep.subr.bf16.mxu0 0
    %941 = vmatpush1.bf16.msra.mxu0 0
    %942 = vmatprep.subr.bf16.mxu0 0
    %943 = vmatpush1.bf16.msra.mxu0 0
    %944 = vmatprep.subr.bf16.mxu0 0
    %945 = vmatpush1.bf16.msra.mxu0 0
    %946 = vmatprep.subr.bf16.mxu0 0
    %947 = vmatpush1.bf16.msra.mxu0 0
    %948 = vmatprep.subr.bf16.mxu0 %v257
    %949 = vmatpush1.bf16.msra.mxu0 %v256
    %950 = vmatprep.subr.bf16.mxu0 %v255
    %951 = vmatpush1.bf16.msra.mxu0 %v254
    %952 = vmatprep.subr.bf16.mxu0 %v253
    %953 = vmatpush1.bf16.msra.mxu0 %v252
    %954 = vmatprep.subr.bf16.mxu0 %v251
    %955 = vmatpush1.bf16.msra.mxu0 %v250
    %956 = vmatprep.subr.bf16.mxu0 0
    %957 = vmatpush2.bf16.msra.mxu0 0
    %958 = vmatprep.subr.bf16.mxu0 0
    %959 = vmatpush2.bf16.msra.mxu0 0
    %960 = vmatprep.subr.bf16.mxu0 0
    %961 = vmatpush2.bf16.msra.mxu0 0
    %962 = vmatprep.subr.bf16.mxu0 0
    %963 = vmatpush2.bf16.msra.mxu0 0
    %964 = vmatprep.subr.bf16.mxu0 0
    %965 = vmatpush2.bf16.msra.mxu0 0
    %966 = vmatprep.subr.bf16.mxu0 0
    %967 = vmatpush2.bf16.msra.mxu0 0
    %968 = vmatprep.subr.bf16.mxu0 0
    %969 = vmatpush2.bf16.msra.mxu0 0
    %970 = vmatprep.subr.bf16.mxu0 0
    %971 = vmatpush2.bf16.msra.mxu0 0
    %972 = vmatprep.mubr.bf16.mxu0 0
    %973 = vmatmul.mubr.bf16.gmra.mxu0 %v873
    %v974 = vpop.f32.mrf.mxu0
    %v975 = vadd.f32 0.0, %v974
    %v976 = vpop.f32.mrf.mxu0
    %v977 = vadd.f32 0.0, %v976
    %v978 = vpop.f32.mrf.mxu0
    %v979 = vpop.f32.mrf.mxu0
    %980 = vdwg.mxu0
    %v981 = vpack.c.bf16 %v939, %v939
    %983 = vrot.lane.b32.xlu0 %v981, 64
    %v984 = vpop.permute.xlu0 %983
    %v986 = vsel %vm266, %v984, 0
    %988 = vmatprep.subr.bf16.mxu0 0
    %989 = vmatpush1.bf16.msra.mxu0 0
    %990 = vmatprep.subr.bf16.mxu0 0
    %991 = vmatpush1.bf16.msra.mxu0 0
    %992 = vmatprep.subr.bf16.mxu0 0
    %993 = vmatpush1.bf16.msra.mxu0 0
    %994 = vmatprep.subr.bf16.mxu0 0
    %995 = vmatpush1.bf16.msra.mxu0 0
    %996 = vmatprep.subr.bf16.mxu0 %v350
    %997 = vmatpush1.bf16.msra.mxu0 %v349
    %998 = vmatprep.subr.bf16.mxu0 %v348
    %999 = vmatpush1.bf16.msra.mxu0 %v347
    %1000 = vmatprep.subr.bf16.mxu0 %v346
    %1001 = vmatpush1.bf16.msra.mxu0 %v345
    %1002 = vmatprep.subr.bf16.mxu0 %v344
    %1003 = vmatpush1.bf16.msra.mxu0 %v343
    %1004 = vmatprep.subr.bf16.mxu0 0
    %1005 = vmatpush2.bf16.msra.mxu0 0
    %1006 = vmatprep.subr.bf16.mxu0 0
    %1007 = vmatpush2.bf16.msra.mxu0 0
    %1008 = vmatprep.subr.bf16.mxu0 0
    %1009 = vmatpush2.bf16.msra.mxu0 0
    %1010 = vmatprep.subr.bf16.mxu0 0
    %1011 = vmatpush2.bf16.msra.mxu0 0
    %1012 = vmatprep.subr.bf16.mxu0 0
    %1013 = vmatpush2.bf16.msra.mxu0 0
    %1014 = vmatprep.subr.bf16.mxu0 0
    %1015 = vmatpush2.bf16.msra.mxu0 0
    %1016 = vmatprep.subr.bf16.mxu0 0
    %1017 = vmatpush2.bf16.msra.mxu0 0
    %1018 = vmatprep.subr.bf16.mxu0 0
    %1019 = vmatpush2.bf16.msra.mxu0 0
    %1020 = vmatprep.mubr.bf16.mxu0 0
    %1021 = vmatmul.mubr.bf16.gmra.mxu0 %v986
    %v1022 = vpop.f32.mrf.mxu0
    %v1023 = vadd.f32 0.0, %v1022
    %v1024 = vpop.f32.mrf.mxu0
    %v1025 = vadd.f32 0.0, %v1024
    %v1026 = vpop.f32.mrf.mxu0
    %v1027 = vpop.f32.mrf.mxu0
    %1028 = vdwg.mxu0
    %v1029 = vld [vmem:[#allocation2] sm:$0xc0]
    %v1030 = vld [vmem:[#allocation2 + $0x8] sm:$0xc0]
    %v1033 = vrot.slane %v975, 2
    %v1034 = vrot.slane %v977, 2
    %v1037 = vadd.f32 %v1029, %v1033
    %v1038 = vadd.f32 %v1030, %v1034
    %v1039 = vxor.u32 %v1037, 2147483648
    %v1040 = vmul.f32 %v1039, 1.442695
    %v1041 = vpow.pop %v1040
    %v1042 = vadd.f32 %v1041, 1.0
    %v1043 = vrcp.pop %v1042
    %v1044 = vmul.f32 1.0, %v1043
    %v1045 = vxor.u32 %v1038, 2147483648
    %v1046 = vmul.f32 %v1045, 1.442695
    %v1047 = vpow.pop %v1046
    %v1048 = vadd.f32 %v1047, 1.0
    %v1049 = vrcp.pop %v1048
    %v1050 = vmul.f32 1.0, %v1049
    %v1051 = vtanh.pop %v1038
    %v1053 = vrot.slane %v864, 6
    %v1055 = vmul.f32 %v1044, %v1053
    %v1056 = vmul.f32 %v1044, %v1051
    %1058 = vrot.lane.b32.xlu0 %v1056, 64
    %v1059 = vpop.permute.xlu0 %1058
    %v1061 = vadd.f32 %v1055, %v1059
    %v1062 = vtanh.pop %v1061
    %v1063 = vmul.f32 %v1050, %v1062
    %v1064 = vpack.c.bf16 %v1063, %v1063
    %v1066 = vrot.slane %v1064, 3
    %1067 = vrot.lane.b32.xlu0 %v1066, 64
    %v1068 = vpop.permute.xlu0 %1067
    %v1070 = vsel %vm266, %v1068, 0
    %1072 = vmatprep.subr.bf16.mxu0 0
    %1073 = vmatpush1.bf16.msra.mxu0 0
    %1074 = vmatprep.subr.bf16.mxu0 0
    %1075 = vmatpush1.bf16.msra.mxu0 0
    %1076 = vmatprep.subr.bf16.mxu0 0
    %1077 = vmatpush1.bf16.msra.mxu0 0
    %1078 = vmatprep.subr.bf16.mxu0 0
    %1079 = vmatpush1.bf16.msra.mxu0 0
    %1080 = vmatprep.subr.bf16.mxu0 %v469
    %1081 = vmatpush1.bf16.msra.mxu0 %v468
    %1082 = vmatprep.subr.bf16.mxu0 %v467
    %1083 = vmatpush1.bf16.msra.mxu0 %v466
    %1084 = vmatprep.subr.bf16.mxu0 %v465
    %1085 = vmatpush1.bf16.msra.mxu0 %v464
    %1086 = vmatprep.subr.bf16.mxu0 %v463
    %1087 = vmatpush1.bf16.msra.mxu0 %v462
    %1088 = vmatprep.subr.bf16.mxu0 0
    %1089 = vmatpush2.bf16.msra.mxu0 0
    %1090 = vmatprep.subr.bf16.mxu0 0
    %1091 = vmatpush2.bf16.msra.mxu0 0
    %1092 = vmatprep.subr.bf16.mxu0 0
    %1093 = vmatpush2.bf16.msra.mxu0 0
    %1094 = vmatprep.subr.bf16.mxu0 0
    %1095 = vmatpush2.bf16.msra.mxu0 0
    %1096 = vmatprep.subr.bf16.mxu0 0
    %1097 = vmatpush2.bf16.msra.mxu0 0
    %1098 = vmatprep.subr.bf16.mxu0 0
    %1099 = vmatpush2.bf16.msra.mxu0 0
    %1100 = vmatprep.subr.bf16.mxu0 0
    %1101 = vmatpush2.bf16.msra.mxu0 0
    %1102 = vmatprep.subr.bf16.mxu0 0
    %1103 = vmatpush2.bf16.msra.mxu0 0
    %1104 = vmatprep.mubr.bf16.mxu0 0
    %1105 = vmatmul.mubr.bf16.gmra.mxu0 %v1070
    %v1106 = vpop.f32.mrf.mxu0
    %v1107 = vadd.f32 %v1023, %v1106
    %v1108 = vpop.f32.mrf.mxu0
    %v1109 = vadd.f32 %v1025, %v1108
    %v1110 = vpop.f32.mrf.mxu0
    %v1111 = vpop.f32.mrf.mxu0
    %1112 = vdwg.mxu0
    %v1113 = vadd.f32 %v1107, %v211
    %v1114 = vadd.f32 %v1109, %v215
    %v1115 = vxor.u32 %v1113, 2147483648
    %v1116 = vmul.f32 %v1115, 1.442695
    %v1117 = vpow.pop %v1116
    %v1118 = vadd.f32 %v1117, 1.0
    %v1119 = vrcp.pop %v1118
    %v1120 = vmul.f32 1.0, %v1119
    %v1121 = vxor.u32 %v1114, 2147483648
    %v1122 = vmul.f32 %v1121, 1.442695
    %v1123 = vpow.pop %v1122
    %v1124 = vadd.f32 %v1123, 1.0
    %v1125 = vrcp.pop %v1124
    %v1126 = vmul.f32 1.0, %v1125
    %v1127 = vtanh.pop %v1114
    %v1128 = vmul.f32 %v1120, %v937
    %v1129 = vmul.f32 %v1120, %v1127
    %1131 = vrot.lane.b32.xlu0 %v1129, 64
    %v1132 = vpop.permute.xlu0 %1131
    %v1134 = vadd.f32 %v1128, %v1132
    %v1135 = vtanh.pop %v1134
    %v1136 = vmul.f32 %v1126, %v1135
    %1137 = vmatprep.subr.bf16.mxu0 0
    %1138 = vmatpush1.bf16.msra.mxu0 0
    %1139 = vmatprep.subr.bf16.mxu0 0
    %1140 = vmatpush1.bf16.msra.mxu0 0
    %1141 = vmatprep.subr.bf16.mxu0 0
    %1142 = vmatpush1.bf16.msra.mxu0 0
    %1143 = vmatprep.subr.bf16.mxu0 0
    %1144 = vmatpush1.bf16.msra.mxu0 0
    %1145 = vmatprep.subr.bf16.mxu0 %v257
    %1146 = vmatpush1.bf16.msra.mxu0 %v256
    %1147 = vmatprep.subr.bf16.mxu0 %v255
    %1148 = vmatpush1.bf16.msra.mxu0 %v254
    %1149 = vmatprep.subr.bf16.mxu0 %v253
    %1150 = vmatpush1.bf16.msra.mxu0 %v252
    %1151 = vmatprep.subr.bf16.mxu0 %v251
    %1152 = vmatpush1.bf16.msra.mxu0 %v250
    %1153 = vmatprep.subr.bf16.mxu0 0
    %1154 = vmatpush2.bf16.msra.mxu0 0
    %1155 = vmatprep.subr.bf16.mxu0 0
    %1156 = vmatpush2.bf16.msra.mxu0 0
    %1157 = vmatprep.subr.bf16.mxu0 0
    %1158 = vmatpush2.bf16.msra.mxu0 0
    %1159 = vmatprep.subr.bf16.mxu0 0
    %1160 = vmatpush2.bf16.msra.mxu0 0
    %1161 = vmatprep.subr.bf16.mxu0 0
    %1162 = vmatpush2.bf16.msra.mxu0 0
    %1163 = vmatprep.subr.bf16.mxu0 0
    %1164 = vmatpush2.bf16.msra.mxu0 0
    %1165 = vmatprep.subr.bf16.mxu0 0
    %1166 = vmatpush2.bf16.msra.mxu0 0
    %1167 = vmatprep.subr.bf16.mxu0 0
    %1168 = vmatpush2.bf16.msra.mxu0 0
    %1169 = vmatprep.mubr.bf16.mxu0 0
    %1170 = vmatmul.mubr.bf16.gmra.mxu0 %v1070
    %v1171 = vpop.f32.mrf.mxu0
    %v1172 = vadd.f32 0.0, %v1171
    %v1173 = vpop.f32.mrf.mxu0
    %v1174 = vadd.f32 0.0, %v1173
    %v1175 = vpop.f32.mrf.mxu0
    %v1176 = vpop.f32.mrf.mxu0
    %1177 = vdwg.mxu0
    %v1178 = vpack.c.bf16 %v1136, %v1136
    %1180 = vrot.lane.b32.xlu0 %v1178, 64
    %v1181 = vpop.permute.xlu0 %1180
    %v1183 = vsel %vm266, %v1181, 0
    %1185 = vmatprep.subr.bf16.mxu0 0
    %1186 = vmatpush1.bf16.msra.mxu0 0
    %1187 = vmatprep.subr.bf16.mxu0 0
    %1188 = vmatpush1.bf16.msra.mxu0 0
    %1189 = vmatprep.subr.bf16.mxu0 0
    %1190 = vmatpush1.bf16.msra.mxu0 0
    %1191 = vmatprep.subr.bf16.mxu0 0
    %1192 = vmatpush1.bf16.msra.mxu0 0
    %1193 = vmatprep.subr.bf16.mxu0 %v350
    %1194 = vmatpush1.bf16.msra.mxu0 %v349
    %1195 = vmatprep.subr.bf16.mxu0 %v348
    %1196 = vmatpush1.bf16.msra.mxu0 %v347
    %1197 = vmatprep.subr.bf16.mxu0 %v346
    %1198 = vmatpush1.bf16.msra.mxu0 %v345
    %1199 = vmatprep.subr.bf16.mxu0 %v344
    %1200 = vmatpush1.bf16.msra.mxu0 %v343
    %1201 = vmatprep.subr.bf16.mxu0 0
    %1202 = vmatpush2.bf16.msra.mxu0 0
    %1203 = vmatprep.subr.bf16.mxu0 0
    %1204 = vmatpush2.bf16.msra.mxu0 0
    %1205 = vmatprep.subr.bf16.mxu0 0
    %1206 = vmatpush2.bf16.msra.mxu0 0
    %1207 = vmatprep.subr.bf16.mxu0 0
    %1208 = vmatpush2.bf16.msra.mxu0 0
    %1209 = vmatprep.subr.bf16.mxu0 0
    %1210 = vmatpush2.bf16.msra.mxu0 0
    %1211 = vmatprep.subr.bf16.mxu0 0
    %1212 = vmatpush2.bf16.msra.mxu0 0
    %1213 = vmatprep.subr.bf16.mxu0 0
    %1214 = vmatpush2.bf16.msra.mxu0 0
    %1215 = vmatprep.subr.bf16.mxu0 0
    %1216 = vmatpush2.bf16.msra.mxu0 0
    %1217 = vmatprep.mubr.bf16.mxu0 0
    %1218 = vmatmul.mubr.bf16.gmra.mxu0 %v1183
    %v1219 = vpop.f32.mrf.mxu0
    %v1220 = vadd.f32 0.0, %v1219
    %v1221 = vpop.f32.mrf.mxu0
    %v1222 = vadd.f32 0.0, %v1221
    %v1223 = vpop.f32.mrf.mxu0
    %v1224 = vpop.f32.mrf.mxu0
    %1225 = vdwg.mxu0
    %v1226 = vld [vmem:[#allocation2 + $0x10] sm:$0x3]
    %v1227 = vld [vmem:[#allocation2 + $0x18] sm:$0x3]
    %v1228 = vadd.f32 %v1226, %v1172
    %v1229 = vadd.f32 %v1227, %v1174
    %v1230 = vxor.u32 %v1228, 2147483648
    %v1231 = vmul.f32 %v1230, 1.442695
    %v1232 = vpow.pop %v1231
    %v1233 = vadd.f32 %v1232, 1.0
    %v1234 = vrcp.pop %v1233
    %v1235 = vmul.f32 1.0, %v1234
    %v1236 = vxor.u32 %v1229, 2147483648
    %v1237 = vmul.f32 %v1236, 1.442695
    %v1238 = vpow.pop %v1237
    %v1239 = vadd.f32 %v1238, 1.0
    %v1240 = vrcp.pop %v1239
    %v1241 = vmul.f32 1.0, %v1240
    %v1242 = vtanh.pop %v1229
    %v1244 = vrot.slane %v1061, 6
    %v1246 = vmul.f32 %v1235, %v1244
    %v1247 = vmul.f32 %v1235, %v1242
    %1249 = vrot.lane.b32.xlu0 %v1247, 64
    %v1250 = vpop.permute.xlu0 %1249
    %v1252 = vadd.f32 %v1246, %v1250
    %v1253 = vtanh.pop %v1252
    %v1254 = vmul.f32 %v1241, %v1253
    %v1255 = vpack.c.bf16 %v1254, %v1254
    %1257 = vrot.lane.b32.xlu0 %v1255, 64
    %v1258 = vpop.permute.xlu0 %1257
    %v1260 = vsel %vm266, %v1258, 0
    %1262 = vmatprep.subr.bf16.mxu0 0
    %1263 = vmatpush1.bf16.msra.mxu0 0
    %1264 = vmatprep.subr.bf16.mxu0 0
    %1265 = vmatpush1.bf16.msra.mxu0 0
    %1266 = vmatprep.subr.bf16.mxu0 0
    %1267 = vmatpush1.bf16.msra.mxu0 0
    %1268 = vmatprep.subr.bf16.mxu0 0
    %1269 = vmatpush1.bf16.msra.mxu0 0
    %1270 = vmatprep.subr.bf16.mxu0 %v469
    %1271 = vmatpush1.bf16.msra.mxu0 %v468
    %1272 = vmatprep.subr.bf16.mxu0 %v467
    %1273 = vmatpush1.bf16.msra.mxu0 %v466
    %1274 = vmatprep.subr.bf16.mxu0 %v465
    %1275 = vmatpush1.bf16.msra.mxu0 %v464
    %1276 = vmatprep.subr.bf16.mxu0 %v463
    %1277 = vmatpush1.bf16.msra.mxu0 %v462
    %1278 = vmatprep.subr.bf16.mxu0 0
    %1279 = vmatpush2.bf16.msra.mxu0 0
    %1280 = vmatprep.subr.bf16.mxu0 0
    %1281 = vmatpush2.bf16.msra.mxu0 0
    %1282 = vmatprep.subr.bf16.mxu0 0
    %1283 = vmatpush2.bf16.msra.mxu0 0
    %1284 = vmatprep.subr.bf16.mxu0 0
    %1285 = vmatpush2.bf16.msra.mxu0 0
    %1286 = vmatprep.subr.bf16.mxu0 0
    %1287 = vmatpush2.bf16.msra.mxu0 0
    %1288 = vmatprep.subr.bf16.mxu0 0
    %1289 = vmatpush2.bf16.msra.mxu0 0
    %1290 = vmatprep.subr.bf16.mxu0 0
    %1291 = vmatpush2.bf16.msra.mxu0 0
    %1292 = vmatprep.subr.bf16.mxu0 0
    %1293 = vmatpush2.bf16.msra.mxu0 0
    %1294 = vmatprep.mubr.bf16.mxu0 0
    %1295 = vmatmul.mubr.bf16.gmra.mxu0 %v1260
    %v1296 = vpop.f32.mrf.mxu0
    %v1297 = vadd.f32 %v1220, %v1296
    %v1298 = vpop.f32.mrf.mxu0
    %v1299 = vadd.f32 %v1222, %v1298
    %v1300 = vpop.f32.mrf.mxu0
    %v1301 = vpop.f32.mrf.mxu0
    %1302 = vdwg.mxu0
    %v1303 = vadd.f32 %v1297, %v211
    %v1304 = vadd.f32 %v1299, %v215
    %v1305 = vxor.u32 %v1303, 2147483648
    %v1306 = vmul.f32 %v1305, 1.442695
    %v1307 = vpow.pop %v1306
    %v1308 = vadd.f32 %v1307, 1.0
    %v1309 = vrcp.pop %v1308
    %v1310 = vmul.f32 1.0, %v1309
    %v1311 = vxor.u32 %v1304, 2147483648
    %v1312 = vmul.f32 %v1311, 1.442695
    %v1313 = vpow.pop %v1312
    %v1314 = vadd.f32 %v1313, 1.0
    %v1315 = vrcp.pop %v1314
    %v1316 = vmul.f32 1.0, %v1315
    %v1317 = vtanh.pop %v1304
    %v1318 = vmul.f32 %v1310, %v1134
    %v1319 = vmul.f32 %v1310, %v1317
    %1321 = vrot.lane.b32.xlu0 %v1319, 64
    %v1322 = vpop.permute.xlu0 %1321
    %v1324 = vadd.f32 %v1318, %v1322
    %v1325 = vtanh.pop %v1324
    %v1326 = vmul.f32 %v1316, %v1325
    %1327 = vmatprep.subr.bf16.mxu0 0
    %1328 = vmatpush1.bf16.msra.mxu0 0
    %1329 = vmatprep.subr.bf16.mxu0 0
    %1330 = vmatpush1.bf16.msra.mxu0 0
    %1331 = vmatprep.subr.bf16.mxu0 0
    %1332 = vmatpush1.bf16.msra.mxu0 0
    %1333 = vmatprep.subr.bf16.mxu0 0
    %1334 = vmatpush1.bf16.msra.mxu0 0
    %1335 = vmatprep.subr.bf16.mxu0 %v257
    %1336 = vmatpush1.bf16.msra.mxu0 %v256
    %1337 = vmatprep.subr.bf16.mxu0 %v255
    %1338 = vmatpush1.bf16.msra.mxu0 %v254
    %1339 = vmatprep.subr.bf16.mxu0 %v253
    %1340 = vmatpush1.bf16.msra.mxu0 %v252
    %1341 = vmatprep.subr.bf16.mxu0 %v251
    %1342 = vmatpush1.bf16.msra.mxu0 %v250
    %1343 = vmatprep.subr.bf16.mxu0 0
    %1344 = vmatpush2.bf16.msra.mxu0 0
    %1345 = vmatprep.subr.bf16.mxu0 0
    %1346 = vmatpush2.bf16.msra.mxu0 0
    %1347 = vmatprep.subr.bf16.mxu0 0
    %1348 = vmatpush2.bf16.msra.mxu0 0
    %1349 = vmatprep.subr.bf16.mxu0 0
    %1350 = vmatpush2.bf16.msra.mxu0 0
    %1351 = vmatprep.subr.bf16.mxu0 0
    %1352 = vmatpush2.bf16.msra.mxu0 0
    %1353 = vmatprep.subr.bf16.mxu0 0
    %1354 = vmatpush2.bf16.msra.mxu0 0
    %1355 = vmatprep.subr.bf16.mxu0 0
    %1356 = vmatpush2.bf16.msra.mxu0 0
    %1357 = vmatprep.subr.bf16.mxu0 0
    %1358 = vmatpush2.bf16.msra.mxu0 0
    %1359 = vmatprep.mubr.bf16.mxu0 0
    %1360 = vmatmul.mubr.bf16.gmra.mxu0 %v1260
    %v1361 = vpop.f32.mrf.mxu0
    %v1362 = vadd.f32 0.0, %v1361
    %v1363 = vpop.f32.mrf.mxu0
    %v1364 = vadd.f32 0.0, %v1363
    %v1365 = vpop.f32.mrf.mxu0
    %v1366 = vpop.f32.mrf.mxu0
    %1367 = vdwg.mxu0
    %v1368 = vpack.c.bf16 %v1326, %v1326
    %1370 = vrot.lane.b32.xlu0 %v1368, 64
    %v1371 = vpop.permute.xlu0 %1370
    %v1373 = vsel %vm266, %v1371, 0
    %1375 = vmatprep.subr.bf16.mxu0 0
    %1376 = vmatpush1.bf16.msra.mxu0 0
    %1377 = vmatprep.subr.bf16.mxu0 0
    %1378 = vmatpush1.bf16.msra.mxu0 0
    %1379 = vmatprep.subr.bf16.mxu0 0
    %1380 = vmatpush1.bf16.msra.mxu0 0
    %1381 = vmatprep.subr.bf16.mxu0 0
    %1382 = vmatpush1.bf16.msra.mxu0 0
    %1383 = vmatprep.subr.bf16.mxu0 %v350
    %1384 = vmatpush1.bf16.msra.mxu0 %v349
    %1385 = vmatprep.subr.bf16.mxu0 %v348
    %1386 = vmatpush1.bf16.msra.mxu0 %v347
    %1387 = vmatprep.subr.bf16.mxu0 %v346
    %1388 = vmatpush1.bf16.msra.mxu0 %v345
    %1389 = vmatprep.subr.bf16.mxu0 %v344
    %1390 = vmatpush1.bf16.msra.mxu0 %v343
    %1391 = vmatprep.subr.bf16.mxu0 0
    %1392 = vmatpush2.bf16.msra.mxu0 0
    %1393 = vmatprep.subr.bf16.mxu0 0
    %1394 = vmatpush2.bf16.msra.mxu0 0
    %1395 = vmatprep.subr.bf16.mxu0 0
    %1396 = vmatpush2.bf16.msra.mxu0 0
    %1397 = vmatprep.subr.bf16.mxu0 0
    %1398 = vmatpush2.bf16.msra.mxu0 0
    %1399 = vmatprep.subr.bf16.mxu0 0
    %1400 = vmatpush2.bf16.msra.mxu0 0
    %1401 = vmatprep.subr.bf16.mxu0 0
    %1402 = vmatpush2.bf16.msra.mxu0 0
    %1403 = vmatprep.subr.bf16.mxu0 0
    %1404 = vmatpush2.bf16.msra.mxu0 0
    %1405 = vmatprep.subr.bf16.mxu0 0
    %1406 = vmatpush2.bf16.msra.mxu0 0
    %1407 = vmatprep.mubr.bf16.mxu0 0
    %1408 = vmatmul.mubr.bf16.gmra.mxu0 %v1373
    %v1409 = vpop.f32.mrf.mxu0
    %v1410 = vadd.f32 0.0, %v1409
    %v1411 = vpop.f32.mrf.mxu0
    %v1412 = vadd.f32 0.0, %v1411
    %v1413 = vpop.f32.mrf.mxu0
    %v1414 = vpop.f32.mrf.mxu0
    %1415 = vdwg.mxu0
    %v1416 = vld [vmem:[#allocation2 + $0x10] sm:$0xc]
    %v1417 = vld [vmem:[#allocation2 + $0x18] sm:$0xc]
    %v1420 = vrot.slane %v1362, 6
    %v1421 = vrot.slane %v1364, 6
    %v1424 = vadd.f32 %v1416, %v1420
    %v1425 = vadd.f32 %v1417, %v1421
    %v1426 = vxor.u32 %v1424, 2147483648
    %v1427 = vmul.f32 %v1426, 1.442695
    %v1428 = vpow.pop %v1427
    %v1429 = vadd.f32 %v1428, 1.0
    %v1430 = vrcp.pop %v1429
    %v1431 = vmul.f32 1.0, %v1430
    %v1432 = vxor.u32 %v1425, 2147483648
    %v1433 = vmul.f32 %v1432, 1.442695
    %v1434 = vpow.pop %v1433
    %v1435 = vadd.f32 %v1434, 1.0
    %v1436 = vrcp.pop %v1435
    %v1437 = vmul.f32 1.0, %v1436
    %v1438 = vtanh.pop %v1425
    %v1440 = vrot.slane %v1252, 6
    %v1442 = vmul.f32 %v1431, %v1440
    %v1443 = vmul.f32 %v1431, %v1438
    %1445 = vrot.lane.b32.xlu0 %v1443, 64
    %v1446 = vpop.permute.xlu0 %1445
    %v1448 = vadd.f32 %v1442, %v1446
    %v1449 = vtanh.pop %v1448
    %v1450 = vmul.f32 %v1437, %v1449
    %v1451 = vpack.c.bf16 %v1450, %v1450
    %v1453 = vrot.slane %v1451, 1
    %1454 = vrot.lane.b32.xlu0 %v1453, 64
    %v1455 = vpop.permute.xlu0 %1454
    %v1457 = vsel %vm266, %v1455, 0
    %1459 = vmatprep.subr.bf16.mxu0 0
    %1460 = vmatpush1.bf16.msra.mxu0 0
    %1461 = vmatprep.subr.bf16.mxu0 0
    %1462 = vmatpush1.bf16.msra.mxu0 0
    %1463 = vmatprep.subr.bf16.mxu0 0
    %1464 = vmatpush1.bf16.msra.mxu0 0
    %1465 = vmatprep.subr.bf16.mxu0 0
    %1466 = vmatpush1.bf16.msra.mxu0 0
    %1467 = vmatprep.subr.bf16.mxu0 %v469
    %1468 = vmatpush1.bf16.msra.mxu0 %v468
    %1469 = vmatprep.subr.bf16.mxu0 %v467
    %1470 = vmatpush1.bf16.msra.mxu0 %v466
    %1471 = vmatprep.subr.bf16.mxu0 %v465
    %1472 = vmatpush1.bf16.msra.mxu0 %v464
    %1473 = vmatprep.subr.bf16.mxu0 %v463
    %1474 = vmatpush1.bf16.msra.mxu0 %v462
    %1475 = vmatprep.subr.bf16.mxu0 0
    %1476 = vmatpush2.bf16.msra.mxu0 0
    %1477 = vmatprep.subr.bf16.mxu0 0
    %1478 = vmatpush2.bf16.msra.mxu0 0
    %1479 = vmatprep.subr.bf16.mxu0 0
    %1480 = vmatpush2.bf16.msra.mxu0 0
    %1481 = vmatprep.subr.bf16.mxu0 0
    %1482 = vmatpush2.bf16.msra.mxu0 0
    %1483 = vmatprep.subr.bf16.mxu0 0
    %1484 = vmatpush2.bf16.msra.mxu0 0
    %1485 = vmatprep.subr.bf16.mxu0 0
    %1486 = vmatpush2.bf16.msra.mxu0 0
    %1487 = vmatprep.subr.bf16.mxu0 0
    %1488 = vmatpush2.bf16.msra.mxu0 0
    %1489 = vmatprep.subr.bf16.mxu0 0
    %1490 = vmatpush2.bf16.msra.mxu0 0
    %1491 = vmatprep.mubr.bf16.mxu0 0
    %1492 = vmatmul.mubr.bf16.gmra.mxu0 %v1457
    %v1493 = vpop.f32.mrf.mxu0
    %v1494 = vadd.f32 %v1410, %v1493
    %v1495 = vpop.f32.mrf.mxu0
    %v1496 = vadd.f32 %v1412, %v1495
    %v1497 = vpop.f32.mrf.mxu0
    %v1498 = vpop.f32.mrf.mxu0
    %1499 = vdwg.mxu0
    %v1500 = vadd.f32 %v1494, %v211
    %v1501 = vadd.f32 %v1496, %v215
    %v1502 = vxor.u32 %v1500, 2147483648
    %v1503 = vmul.f32 %v1502, 1.442695
    %v1504 = vpow.pop %v1503
    %v1505 = vadd.f32 %v1504, 1.0
    %v1506 = vrcp.pop %v1505
    %v1507 = vmul.f32 1.0, %v1506
    %v1508 = vxor.u32 %v1501, 2147483648
    %v1509 = vmul.f32 %v1508, 1.442695
    %v1510 = vpow.pop %v1509
    %v1511 = vadd.f32 %v1510, 1.0
    %v1512 = vrcp.pop %v1511
    %v1513 = vmul.f32 1.0, %v1512
    %v1514 = vtanh.pop %v1501
    %v1515 = vmul.f32 %v1507, %v1324
    %v1516 = vmul.f32 %v1507, %v1514
    %1518 = vrot.lane.b32.xlu0 %v1516, 64
    %v1519 = vpop.permute.xlu0 %1518
    %v1521 = vadd.f32 %v1515, %v1519
    %v1522 = vtanh.pop %v1521
    %v1523 = vmul.f32 %v1513, %v1522
    %1524 = vmatprep.subr.bf16.mxu0 0
    %1525 = vmatpush1.bf16.msra.mxu0 0
    %1526 = vmatprep.subr.bf16.mxu0 0
    %1527 = vmatpush1.bf16.msra.mxu0 0
    %1528 = vmatprep.subr.bf16.mxu0 0
    %1529 = vmatpush1.bf16.msra.mxu0 0
    %1530 = vmatprep.subr.bf16.mxu0 0
    %1531 = vmatpush1.bf16.msra.mxu0 0
    %1532 = vmatprep.subr.bf16.mxu0 %v257
    %1533 = vmatpush1.bf16.msra.mxu0 %v256
    %1534 = vmatprep.subr.bf16.mxu0 %v255
    %1535 = vmatpush1.bf16.msra.mxu0 %v254
    %1536 = vmatprep.subr.bf16.mxu0 %v253
    %1537 = vmatpush1.bf16.msra.mxu0 %v252
    %1538 = vmatprep.subr.bf16.mxu0 %v251
    %1539 = vmatpush1.bf16.msra.mxu0 %v250
    %1540 = vmatprep.subr.bf16.mxu0 0
    %1541 = vmatpush2.bf16.msra.mxu0 0
    %1542 = vmatprep.subr.bf16.mxu0 0
    %1543 = vmatpush2.bf16.msra.mxu0 0
    %1544 = vmatprep.subr.bf16.mxu0 0
    %1545 = vmatpush2.bf16.msra.mxu0 0
    %1546 = vmatprep.subr.bf16.mxu0 0
    %1547 = vmatpush2.bf16.msra.mxu0 0
    %1548 = vmatprep.subr.bf16.mxu0 0
    %1549 = vmatpush2.bf16.msra.mxu0 0
    %1550 = vmatprep.subr.bf16.mxu0 0
    %1551 = vmatpush2.bf16.msra.mxu0 0
    %1552 = vmatprep.subr.bf16.mxu0 0
    %1553 = vmatpush2.bf16.msra.mxu0 0
    %1554 = vmatprep.subr.bf16.mxu0 0
    %1555 = vmatpush2.bf16.msra.mxu0 0
    %1556 = vmatprep.mubr.bf16.mxu0 0
    %1557 = vmatmul.mubr.bf16.gmra.mxu0 %v1457
    %v1558 = vpop.f32.mrf.mxu0
    %v1559 = vadd.f32 0.0, %v1558
    %v1560 = vpop.f32.mrf.mxu0
    %v1561 = vadd.f32 0.0, %v1560
    %v1562 = vpop.f32.mrf.mxu0
    %v1563 = vpop.f32.mrf.mxu0
    %1564 = vdwg.mxu0
    %v1565 = vpack.c.bf16 %v1523, %v1523
    %1567 = vrot.lane.b32.xlu0 %v1565, 64
    %v1568 = vpop.permute.xlu0 %1567
    %v1570 = vsel %vm266, %v1568, 0
    %1572 = vmatprep.subr.bf16.mxu0 0
    %1573 = vmatpush1.bf16.msra.mxu0 0
    %1574 = vmatprep.subr.bf16.mxu0 0
    %1575 = vmatpush1.bf16.msra.mxu0 0
    %1576 = vmatprep.subr.bf16.mxu0 0
    %1577 = vmatpush1.bf16.msra.mxu0 0
    %1578 = vmatprep.subr.bf16.mxu0 0
    %1579 = vmatpush1.bf16.msra.mxu0 0
    %1580 = vmatprep.subr.bf16.mxu0 %v350
    %1581 = vmatpush1.bf16.msra.mxu0 %v349
    %1582 = vmatprep.subr.bf16.mxu0 %v348
    %1583 = vmatpush1.bf16.msra.mxu0 %v347
    %1584 = vmatprep.subr.bf16.mxu0 %v346
    %1585 = vmatpush1.bf16.msra.mxu0 %v345
    %1586 = vmatprep.subr.bf16.mxu0 %v344
    %1587 = vmatpush1.bf16.msra.mxu0 %v343
    %1588 = vmatprep.subr.bf16.mxu0 0
    %1589 = vmatpush2.bf16.msra.mxu0 0
    %1590 = vmatprep.subr.bf16.mxu0 0
    %1591 = vmatpush2.bf16.msra.mxu0 0
    %1592 = vmatprep.subr.bf16.mxu0 0
    %1593 = vmatpush2.bf16.msra.mxu0 0
    %1594 = vmatprep.subr.bf16.mxu0 0
    %1595 = vmatpush2.bf16.msra.mxu0 0
    %1596 = vmatprep.subr.bf16.mxu0 0
    %1597 = vmatpush2.bf16.msra.mxu0 0
    %1598 = vmatprep.subr.bf16.mxu0 0
    %1599 = vmatpush2.bf16.msra.mxu0 0
    %1600 = vmatprep.subr.bf16.mxu0 0
    %1601 = vmatpush2.bf16.msra.mxu0 0
    %1602 = vmatprep.subr.bf16.mxu0 0
    %1603 = vmatpush2.bf16.msra.mxu0 0
    %1604 = vmatprep.mubr.bf16.mxu0 0
    %1605 = vmatmul.mubr.bf16.gmra.mxu0 %v1570
    %v1606 = vpop.f32.mrf.mxu0
    %v1607 = vadd.f32 0.0, %v1606
    %v1608 = vpop.f32.mrf.mxu0
    %v1609 = vadd.f32 0.0, %v1608
    %v1610 = vpop.f32.mrf.mxu0
    %v1611 = vpop.f32.mrf.mxu0
    %1612 = vdwg.mxu0
    %v1613 = vld [vmem:[#allocation2 + $0x10] sm:$0x30]
    %v1614 = vld [vmem:[#allocation2 + $0x18] sm:$0x30]
    %v1617 = vrot.slane %v1559, 4
    %v1618 = vrot.slane %v1561, 4
    %v1621 = vadd.f32 %v1613, %v1617
    %v1622 = vadd.f32 %v1614, %v1618
    %v1623 = vxor.u32 %v1621, 2147483648
    %v1624 = vmul.f32 %v1623, 1.442695
    %v1625 = vpow.pop %v1624
    %v1626 = vadd.f32 %v1625, 1.0
    %v1627 = vrcp.pop %v1626
    %v1628 = vmul.f32 1.0, %v1627
    %v1629 = vxor.u32 %v1622, 2147483648
    %v1630 = vmul.f32 %v1629, 1.442695
    %v1631 = vpow.pop %v1630
    %v1632 = vadd.f32 %v1631, 1.0
    %v1633 = vrcp.pop %v1632
    %v1634 = vmul.f32 1.0, %v1633
    %v1635 = vtanh.pop %v1622
    %v1637 = vrot.slane %v1448, 6
    %v1639 = vmul.f32 %v1628, %v1637
    %v1640 = vmul.f32 %v1628, %v1635
    %1642 = vrot.lane.b32.xlu0 %v1640, 64
    %v1643 = vpop.permute.xlu0 %1642
    %v1645 = vadd.f32 %v1639, %v1643
    %v1646 = vtanh.pop %v1645
    %v1647 = vmul.f32 %v1634, %v1646
    %v1648 = vpack.c.bf16 %v1647, %v1647
    %v1650 = vrot.slane %v1648, 2
    %1651 = vrot.lane.b32.xlu0 %v1650, 64
    %v1652 = vpop.permute.xlu0 %1651
    %v1654 = vsel %vm266, %v1652, 0
    %1656 = vmatprep.subr.bf16.mxu0 0
    %1657 = vmatpush1.bf16.msra.mxu0 0
    %1658 = vmatprep.subr.bf16.mxu0 0
    %1659 = vmatpush1.bf16.msra.mxu0 0
    %1660 = vmatprep.subr.bf16.mxu0 0
    %1661 = vmatpush1.bf16.msra.mxu0 0
    %1662 = vmatprep.subr.bf16.mxu0 0
    %1663 = vmatpush1.bf16.msra.mxu0 0
    %1664 = vmatprep.subr.bf16.mxu0 %v469
    %1665 = vmatpush1.bf16.msra.mxu0 %v468
    %1666 = vmatprep.subr.bf16.mxu0 %v467
    %1667 = vmatpush1.bf16.msra.mxu0 %v466
    %1668 = vmatprep.subr.bf16.mxu0 %v465
    %1669 = vmatpush1.bf16.msra.mxu0 %v464
    %1670 = vmatprep.subr.bf16.mxu0 %v463
    %1671 = vmatpush1.bf16.msra.mxu0 %v462
    %1672 = vmatprep.subr.bf16.mxu0 0
    %1673 = vmatpush2.bf16.msra.mxu0 0
    %1674 = vmatprep.subr.bf16.mxu0 0
    %1675 = vmatpush2.bf16.msra.mxu0 0
    %1676 = vmatprep.subr.bf16.mxu0 0
    %1677 = vmatpush2.bf16.msra.mxu0 0
    %1678 = vmatprep.subr.bf16.mxu0 0
    %1679 = vmatpush2.bf16.msra.mxu0 0
    %1680 = vmatprep.subr.bf16.mxu0 0
    %1681 = vmatpush2.bf16.msra.mxu0 0
    %1682 = vmatprep.subr.bf16.mxu0 0
    %1683 = vmatpush2.bf16.msra.mxu0 0
    %1684 = vmatprep.subr.bf16.mxu0 0
    %1685 = vmatpush2.bf16.msra.mxu0 0
    %1686 = vmatprep.subr.bf16.mxu0 0
    %1687 = vmatpush2.bf16.msra.mxu0 0
    %1688 = vmatprep.mubr.bf16.mxu0 0
    %1689 = vmatmul.mubr.bf16.gmra.mxu0 %v1654
    %v1690 = vpop.f32.mrf.mxu0
    %v1691 = vadd.f32 %v1607, %v1690
    %v1692 = vpop.f32.mrf.mxu0
    %v1693 = vadd.f32 %v1609, %v1692
    %v1694 = vpop.f32.mrf.mxu0
    %v1695 = vpop.f32.mrf.mxu0
    %1696 = vdwg.mxu0
    %v1697 = vadd.f32 %v1691, %v211
    %v1698 = vadd.f32 %v1693, %v215
    %v1699 = vxor.u32 %v1697, 2147483648
    %v1700 = vmul.f32 %v1699, 1.442695
    %v1701 = vpow.pop %v1700
    %v1702 = vadd.f32 %v1701, 1.0
    %v1703 = vrcp.pop %v1702
    %v1704 = vmul.f32 1.0, %v1703
    %v1705 = vxor.u32 %v1698, 2147483648
    %v1706 = vmul.f32 %v1705, 1.442695
    %v1707 = vpow.pop %v1706
    %v1708 = vadd.f32 %v1707, 1.0
    %v1709 = vrcp.pop %v1708
    %v1710 = vmul.f32 1.0, %v1709
    %v1711 = vtanh.pop %v1698
    %v1712 = vmul.f32 %v1704, %v1521
    %v1713 = vmul.f32 %v1704, %v1711
    %1715 = vrot.lane.b32.xlu0 %v1713, 64
    %v1716 = vpop.permute.xlu0 %1715
    %v1718 = vadd.f32 %v1712, %v1716
    %v1719 = vtanh.pop %v1718
    %v1720 = vmul.f32 %v1710, %v1719
    %1721 = vmatprep.subr.bf16.mxu0 0
    %1722 = vmatpush1.bf16.msra.mxu0 0
    %1723 = vmatprep.subr.bf16.mxu0 0
    %1724 = vmatpush1.bf16.msra.mxu0 0
    %1725 = vmatprep.subr.bf16.mxu0 0
    %1726 = vmatpush1.bf16.msra.mxu0 0
    %1727 = vmatprep.subr.bf16.mxu0 0
    %1728 = vmatpush1.bf16.msra.mxu0 0
    %1729 = vmatprep.subr.bf16.mxu0 %v257
    %1730 = vmatpush1.bf16.msra.mxu0 %v256
    %1731 = vmatprep.subr.bf16.mxu0 %v255
    %1732 = vmatpush1.bf16.msra.mxu0 %v254
    %1733 = vmatprep.subr.bf16.mxu0 %v253
    %1734 = vmatpush1.bf16.msra.mxu0 %v252
    %1735 = vmatprep.subr.bf16.mxu0 %v251
    %1736 = vmatpush1.bf16.msra.mxu0 %v250
    %1737 = vmatprep.subr.bf16.mxu0 0
    %1738 = vmatpush2.bf16.msra.mxu0 0
    %1739 = vmatprep.subr.bf16.mxu0 0
    %1740 = vmatpush2.bf16.msra.mxu0 0
    %1741 = vmatprep.subr.bf16.mxu0 0
    %1742 = vmatpush2.bf16.msra.mxu0 0
    %1743 = vmatprep.subr.bf16.mxu0 0
    %1744 = vmatpush2.bf16.msra.mxu0 0
    %1745 = vmatprep.subr.bf16.mxu0 0
    %1746 = vmatpush2.bf16.msra.mxu0 0
    %1747 = vmatprep.subr.bf16.mxu0 0
    %1748 = vmatpush2.bf16.msra.mxu0 0
    %1749 = vmatprep.subr.bf16.mxu0 0
    %1750 = vmatpush2.bf16.msra.mxu0 0
    %1751 = vmatprep.subr.bf16.mxu0 0
    %1752 = vmatpush2.bf16.msra.mxu0 0
    %1753 = vmatprep.mubr.bf16.mxu0 0
    %1754 = vmatmul.mubr.bf16.gmra.mxu0 %v1654
    %v1755 = vpop.f32.mrf.mxu0
    %v1756 = vadd.f32 0.0, %v1755
    %v1757 = vpop.f32.mrf.mxu0
    %v1758 = vadd.f32 0.0, %v1757
    %v1759 = vpop.f32.mrf.mxu0
    %v1760 = vpop.f32.mrf.mxu0
    %1761 = vdwg.mxu0
    %v1762 = vpack.c.bf16 %v1720, %v1720
    %1764 = vrot.lane.b32.xlu0 %v1762, 64
    %v1765 = vpop.permute.xlu0 %1764
    %v1767 = vsel %vm266, %v1765, 0
    %1769 = vmatprep.subr.bf16.mxu0 0
    %1770 = vmatpush1.bf16.msra.mxu0 0
    %1771 = vmatprep.subr.bf16.mxu0 0
    %1772 = vmatpush1.bf16.msra.mxu0 0
    %1773 = vmatprep.subr.bf16.mxu0 0
    %1774 = vmatpush1.bf16.msra.mxu0 0
    %1775 = vmatprep.subr.bf16.mxu0 0
    %1776 = vmatpush1.bf16.msra.mxu0 0
    %1777 = vmatprep.subr.bf16.mxu0 %v350
    %1778 = vmatpush1.bf16.msra.mxu0 %v349
    %1779 = vmatprep.subr.bf16.mxu0 %v348
    %1780 = vmatpush1.bf16.msra.mxu0 %v347
    %1781 = vmatprep.subr.bf16.mxu0 %v346
    %1782 = vmatpush1.bf16.msra.mxu0 %v345
    %1783 = vmatprep.subr.bf16.mxu0 %v344
    %1784 = vmatpush1.bf16.msra.mxu0 %v343
    %1785 = vmatprep.subr.bf16.mxu0 0
    %1786 = vmatpush2.bf16.msra.mxu0 0
    %1787 = vmatprep.subr.bf16.mxu0 0
    %1788 = vmatpush2.bf16.msra.mxu0 0
    %1789 = vmatprep.subr.bf16.mxu0 0
    %1790 = vmatpush2.bf16.msra.mxu0 0
    %1791 = vmatprep.subr.bf16.mxu0 0
    %1792 = vmatpush2.bf16.msra.mxu0 0
    %1793 = vmatprep.subr.bf16.mxu0 0
    %1794 = vmatpush2.bf16.msra.mxu0 0
    %1795 = vmatprep.subr.bf16.mxu0 0
    %1796 = vmatpush2.bf16.msra.mxu0 0
    %1797 = vmatprep.subr.bf16.mxu0 0
    %1798 = vmatpush2.bf16.msra.mxu0 0
    %1799 = vmatprep.subr.bf16.mxu0 0
    %1800 = vmatpush2.bf16.msra.mxu0 0
    %1801 = vmatprep.mubr.bf16.mxu0 0
    %1802 = vmatmul.mubr.bf16.gmra.mxu0 %v1767
    %v1803 = vpop.f32.mrf.mxu0
    %v1804 = vadd.f32 0.0, %v1803
    %v1805 = vpop.f32.mrf.mxu0
    %v1806 = vadd.f32 0.0, %v1805
    %v1807 = vpop.f32.mrf.mxu0
    %v1808 = vpop.f32.mrf.mxu0
    %1809 = vdwg.mxu0
    %v1810 = vld [vmem:[#allocation2 + $0x10] sm:$0xc0]
    %v1811 = vld [vmem:[#allocation2 + $0x18] sm:$0xc0]
    %v1814 = vrot.slane %v1756, 2
    %v1815 = vrot.slane %v1758, 2
    %v1818 = vadd.f32 %v1810, %v1814
    %v1819 = vadd.f32 %v1811, %v1815
    %v1820 = vxor.u32 %v1818, 2147483648
    %v1821 = vmul.f32 %v1820, 1.442695
    %v1822 = vpow.pop %v1821
    %v1823 = vadd.f32 %v1822, 1.0
    %v1824 = vrcp.pop %v1823
    %v1825 = vmul.f32 1.0, %v1824
    %v1826 = vxor.u32 %v1819, 2147483648
    %v1827 = vmul.f32 %v1826, 1.442695
    %v1828 = vpow.pop %v1827
    %v1829 = vadd.f32 %v1828, 1.0
    %v1830 = vrcp.pop %v1829
    %v1831 = vmul.f32 1.0, %v1830
    %v1832 = vtanh.pop %v1819
    %v1834 = vrot.slane %v1645, 6
    %v1836 = vmul.f32 %v1825, %v1834
    %v1837 = vmul.f32 %v1825, %v1832
    %1839 = vrot.lane.b32.xlu0 %v1837, 64
    %v1840 = vpop.permute.xlu0 %1839
    %v1842 = vadd.f32 %v1836, %v1840
    %v1843 = vtanh.pop %v1842
    %v1844 = vmul.f32 %v1831, %v1843
    %v1845 = vpack.c.bf16 %v1844, %v1844
    %v1847 = vrot.slane %v1845, 3
    %1848 = vrot.lane.b32.xlu0 %v1847, 64
    %v1849 = vpop.permute.xlu0 %1848
    %v1851 = vsel %vm266, %v1849, 0
    %1853 = vmatprep.subr.bf16.mxu0 0
    %1854 = vmatpush1.bf16.msra.mxu0 0
    %1855 = vmatprep.subr.bf16.mxu0 0
    %1856 = vmatpush1.bf16.msra.mxu0 0
    %1857 = vmatprep.subr.bf16.mxu0 0
    %1858 = vmatpush1.bf16.msra.mxu0 0
    %1859 = vmatprep.subr.bf16.mxu0 0
    %1860 = vmatpush1.bf16.msra.mxu0 0
    %1861 = vmatprep.subr.bf16.mxu0 %v469
    %1862 = vmatpush1.bf16.msra.mxu0 %v468
    %1863 = vmatprep.subr.bf16.mxu0 %v467
    %1864 = vmatpush1.bf16.msra.mxu0 %v466
    %1865 = vmatprep.subr.bf16.mxu0 %v465
    %1866 = vmatpush1.bf16.msra.mxu0 %v464
    %1867 = vmatprep.subr.bf16.mxu0 %v463
    %1868 = vmatpush1.bf16.msra.mxu0 %v462
    %1869 = vmatprep.subr.bf16.mxu0 0
    %1870 = vmatpush2.bf16.msra.mxu0 0
    %1871 = vmatprep.subr.bf16.mxu0 0
    %1872 = vmatpush2.bf16.msra.mxu0 0
    %1873 = vmatprep.subr.bf16.mxu0 0
    %1874 = vmatpush2.bf16.msra.mxu0 0
    %1875 = vmatprep.subr.bf16.mxu0 0
    %1876 = vmatpush2.bf16.msra.mxu0 0
    %1877 = vmatprep.subr.bf16.mxu0 0
    %1878 = vmatpush2.bf16.msra.mxu0 0
    %1879 = vmatprep.subr.bf16.mxu0 0
    %1880 = vmatpush2.bf16.msra.mxu0 0
    %1881 = vmatprep.subr.bf16.mxu0 0
    %1882 = vmatpush2.bf16.msra.mxu0 0
    %1883 = vmatprep.subr.bf16.mxu0 0
    %1884 = vmatpush2.bf16.msra.mxu0 0
    %1885 = vmatprep.mubr.bf16.mxu0 0
    %1886 = vmatmul.mubr.bf16.gmra.mxu0 %v1851
    %v1887 = vpop.f32.mrf.mxu0
    %v1888 = vadd.f32 %v1804, %v1887
    %v1889 = vpop.f32.mrf.mxu0
    %v1890 = vadd.f32 %v1806, %v1889
    %v1891 = vpop.f32.mrf.mxu0
    %v1892 = vpop.f32.mrf.mxu0
    %1893 = vdwg.mxu0
    %v1894 = vadd.f32 %v1888, %v211
    %v1895 = vadd.f32 %v1890, %v215
    %v1896 = vxor.u32 %v1894, 2147483648
    %v1897 = vmul.f32 %v1896, 1.442695
    %v1898 = vpow.pop %v1897
    %v1899 = vadd.f32 %v1898, 1.0
    %v1900 = vrcp.pop %v1899
    %v1901 = vmul.f32 1.0, %v1900
    %v1902 = vxor.u32 %v1895, 2147483648
    %v1903 = vmul.f32 %v1902, 1.442695
    %v1904 = vpow.pop %v1903
    %v1905 = vadd.f32 %v1904, 1.0
    %v1906 = vrcp.pop %v1905
    %v1907 = vmul.f32 1.0, %v1906
    %v1908 = vtanh.pop %v1895
    %v1909 = vmul.f32 %v1901, %v1718
    %v1910 = vmul.f32 %v1901, %v1908
    %1912 = vrot.lane.b32.xlu0 %v1910, 64
    %v1913 = vpop.permute.xlu0 %1912
    %v1915 = vadd.f32 %v1909, %v1913
    %v1916 = vtanh.pop %v1915
    %v1917 = vmul.f32 %v1907, %v1916
    %v1918 = vpack.c.bf16 %v1917, %v1917
    %v1919 = vld [vmem:[%s7] sm:$0xf]
    %v1920 = vld [vmem:[%s7 + $0x4] sm:$0xf]
    %v1921 = vld [vmem:[%s7 + $0x8] sm:$0xf]
    %v1922 = vld [vmem:[%s7 + $0xc] sm:$0xf]
    %v1923 = vld [vmem:[%s7 + $0x10] sm:$0xf]
    %v1924 = vld [vmem:[%s7 + $0x14] sm:$0xf]
    %v1925 = vld [vmem:[%s7 + $0x18] sm:$0xf]
    %v1926 = vld [vmem:[%s7 + $0x1c] sm:$0xf]
    %v1927 = vld [vmem:[#allocation11] sm:$0x1]
    %v1929 = vlaneseq
    %v1930 = vshrl.u32 %v1929, 7
    %v1931 = vsub.s32 0, %v1930
    %v1932 = vrot.slane %v1927, %v1931
    %1935 = vrot.lane.b32.xlu0 %v1918, 64
    %v1936 = vpop.permute.xlu0 %1935
    %v1945 = vunpack.c.l.b16 %v1919
    %v1946 = vunpack.c.l.b16 %v1920
    %v1947 = vunpack.c.l.b16 %v1921
    %v1948 = vunpack.c.l.b16 %v1922
    %v1949 = vunpack.c.l.b16 %v1923
    %v1950 = vunpack.c.l.b16 %v1924
    %v1951 = vunpack.c.l.b16 %v1925
    %v1952 = vunpack.c.l.b16 %v1926
    %v1953 = vpack.c.b16 %v1946, %v1945
    %v1954 = vpack.c.b16 %v1948, %v1947
    %v1955 = vpack.c.b16 %v1950, %v1949
    %v1956 = vpack.c.b16 %v1952, %v1951
    %v1962 = vsel %vm266, %v1936, 0
    %1964 = vmatprep.subr.bf16.mxu0 0
    %1965 = vmatpush1.bf16.msra.mxu0 0
    %1966 = vmatprep.subr.bf16.mxu0 0
    %1967 = vmatpush1.bf16.msra.mxu0 0
    %1968 = vmatprep.subr.bf16.mxu0 0
    %1969 = vmatpush1.bf16.msra.mxu0 0
    %1970 = vmatprep.subr.bf16.mxu0 0
    %1971 = vmatpush1.bf16.msra.mxu0 0
    %1972 = vmatprep.subr.bf16.mxu0 0
    %1973 = vmatpush1.bf16.msra.mxu0 %v1956
    %1974 = vmatprep.subr.bf16.mxu0 0
    %1975 = vmatpush1.bf16.msra.mxu0 %v1955
    %1976 = vmatprep.subr.bf16.mxu0 0
    %1977 = vmatpush1.bf16.msra.mxu0 %v1954
    %1978 = vmatprep.subr.bf16.mxu0 0
    %1979 = vmatpush1.bf16.msra.mxu0 %v1953
    %1980 = vmatprep.subr.bf16.mxu0 0
    %1981 = vmatpush2.bf16.msra.mxu0 0
    %1982 = vmatprep.subr.bf16.mxu0 0
    %1983 = vmatpush2.bf16.msra.mxu0 0
    %1984 = vmatprep.subr.bf16.mxu0 0
    %1985 = vmatpush2.bf16.msra.mxu0 0
    %1986 = vmatprep.subr.bf16.mxu0 0
    %1987 = vmatpush2.bf16.msra.mxu0 0
    %1988 = vmatprep.subr.bf16.mxu0 0
    %1989 = vmatpush2.bf16.msra.mxu0 0
    %1990 = vmatprep.subr.bf16.mxu0 0
    %1991 = vmatpush2.bf16.msra.mxu0 0
    %1992 = vmatprep.subr.bf16.mxu0 0
    %1993 = vmatpush2.bf16.msra.mxu0 0
    %1994 = vmatprep.subr.bf16.mxu0 0
    %1995 = vmatpush2.bf16.msra.mxu0 0
    %1996 = vmatprep.mubr.bf16.mxu0 0
    %1997 = vmatmul.mubr.bf16.gmra.mxu0 %v1962
    %v1998 = vpop.f32.mrf.mxu0
    %v1999 = vadd.f32 %v1932, %v1998
    %v2000 = vpop.f32.mrf.mxu0
    %v2001 = vpop.f32.mrf.mxu0
    %v2002 = vpop.f32.mrf.mxu0
    %2003 = vdwg.mxu0
    %vm2004 = vcmask 17408
    %2005 = vst.msk [vmem:[#allocation12] sm:$0x3] %vm2004, %v1999
    // Predicated region
    $region58: #{lstm_predictor.1} parent=1 // pred_check
      _
    $region59: #{lstm_predictor.1} parent=1 // pred_check_branch
      %2007 = sbr.rel (0) target = $region61
    $region60: #{lstm_predictor.1} parent=1 // pred_region
      %s2009 = ssub.s32 32, 32
      %2010 = vsyncadd [#allocation5], %s2009
      %s2012 = sshll.u32 [#allocation12], 4
      %s2013 = int_to_ptr.vmem [resolvable:$true] %s2012
      %2015 = dma.vmem_to_hbm [thread:$0]  %s2013, 32, %s9, [#allocation5]
    $region61: #{lstm_predictor.1} parent=1 // pred_fallthru
      _
    // Predicated region
    $region62: #{lstm_predictor.1} parent=1 // pred_check
      _
    $region63: #{lstm_predictor.1} parent=1 // pred_check_branch
      %2017 = sbr.rel (0) target = $region65
    $region64: #{lstm_predictor.1} parent=1 // pred_region
      %2018 = dma.done [#allocation5], 32
    $region65: #{lstm_predictor.1} parent=1 // pred_fallthru
      _
    %2019 = vsyncpa [#allocation4], 1
    %2020 = vsyncpa [#allocation7], 1
    %2021 = vsyncpa [#allocation10], 1
    %2022 = vsyncpa [#allocation5], 1

</llo_original>
